<compile_context>
chip_gen: v7x
topology: tpu7x:2x2x1
jax: 0.10.0
libtpu: 0.0.40
codegen_flags: <defaults>
</compile_context>

<pallas_src>
import functools
import math

import jax
import jax.numpy as jnp
from jax.experimental import pallas as pl
from jax.experimental.pallas import tpu as pltpu

LN_EPS = 1e-6  # outer LN eps per the module; inner LNs assumed the same.
# TODO(synk): if the reference EncoderLayer uses nn.LayerNorm's default eps=1e-5
# for its internal norms, change the inner-LN eps accordingly.


def _layer_norm(x, gamma, beta):
    """LayerNorm over the last axis, f32 math."""
    mean = jnp.mean(x, axis=-1, keepdims=True)
    var = jnp.mean(jnp.square(x - mean), axis=-1, keepdims=True)
    return (x - mean) * jax.lax.rsqrt(var + LN_EPS) * gamma + beta


# -----------------------------------------------------------------------------
# Fused kernel: one encoder layer per inner grid step, activation resident in VMEM.
# -----------------------------------------------------------------------------
def encoder_kernel(x_ref, bias_ref,
                   wq_ref, wk_ref, wv_ref, wo_ref, bo_ref,
                   ln1g_ref, ln1b_ref, w1_ref, b1_ref, w2_ref, b2_ref,
                   ln2g_ref, ln2b_ref,
                   out_ref, act_ref, oh_ref, *, n_head, d_k, d_v):
    layer = pl.program_id(1)
    n_layers = pl.num_programs(1)
    Bb, S, D = x_ref.shape
    R = Bb * S
    f32, bf16 = jnp.float32, jnp.bfloat16

    # ---- layer 0: load the pre-normalized embedding block into the resident act
    @pl.when(layer == 0)
    def _init():
        act_ref[...] = x_ref[...].reshape(R, D)

    x2 = act_ref[...]                                   # [R, D] f32, resident
    xb = x2.astype(bf16)

    # ---- multi-head self-attention: head-fused wide projections (one MXU matmul
    # each); 1/sqrt(d_k) is already folded into Wq; cast to bf16 exactly once.
    q = jnp.dot(xb, wq_ref[0], preferred_element_type=f32).astype(bf16)   # [R, H*dk]
    k = jnp.dot(xb, wk_ref[0], preferred_element_type=f32).astype(bf16)   # [R, H*dk]
    v = jnp.dot(xb, wv_ref[0], preferred_element_type=f32).astype(bf16)   # [R, H*dv]
    q3 = q.reshape(Bb, S, n_head * d_k)
    k3 = k.reshape(Bb, S, n_head * d_k)
    v3 = v.reshape(Bb, S, n_head * d_v)

    bias = bias_ref[...]                                # [Bb, 1, S] additive key-pad bias

    # Per-head, batched over the whole batch block; no K transpose is materialized
    # (contraction on the last axes) and no lane concatenation (head outputs land
    # in the oh_ref VMEM scratch).
    # TODO(synk): for large n_head / seq_len turn this static loop into a
    # key-blocked lax.fori_loop (flash style) to bound the working set on v7x.
    for h in range(n_head):
        qh = q3[:, :, h * d_k:(h + 1) * d_k]            # [Bb, S, dk] bf16
        kh = k3[:, :, h * d_k:(h + 1) * d_k]            # [Bb, S, dk] bf16
        vh = v3[:, :, h * d_v:(h + 1) * d_v]            # [Bb, S, dv] bf16
        s = jnp.einsum('bqd,bkd->bqk', qh, kh,
                       preferred_element_type=f32) + bias       # [Bb, S, S] f32
        s = s - jnp.max(s, axis=-1, keepdims=True)
        p = jnp.exp(s)
        p = p * pl.reciprocal(jnp.sum(p, axis=-1, keepdims=True), approx=True)
        oh_ref[:, :, h * d_v:(h + 1) * d_v] = jnp.einsum(
            'bqk,bkd->bqd', p.astype(bf16), vh, preferred_element_type=f32)

    # single wide output projection over all heads
    o_all = oh_ref[...].reshape(R, n_head * d_v).astype(bf16)
    attn = jnp.dot(o_all, wo_ref[0], preferred_element_type=f32) + bo_ref[0]   # [R, D]

    # residual + LayerNorm (post-norm)
    h1 = _layer_norm(attn + x2, ln1g_ref[0], ln1b_ref[0])

    # ---- position-wise FFN (bf16 MXU, f32 accumulate)
    # TODO(synk): at production d_ffn, tile this over d_ffn chunks for v7x's 64 MiB VMEM.
    f = jnp.dot(h1.astype(bf16), w1_ref[0], preferred_element_type=f32) + b1_ref[0]
    f = jnp.maximum(f, 0.0)
    f = jnp.dot(f.astype(bf16), w2_ref[0], preferred_element_type=f32) + b2_ref[0]

    y = _layer_norm(f + h1, ln2g_ref[0], ln2b_ref[0])   # [R, D]
    act_ref[...] = y                                    # stays resident for next layer

    @pl.when(layer == n_layers - 1)
    def _finalize():
        out_ref[...] = y.reshape(Bb, S, D)


# -----------------------------------------------------------------------------
# Wrapper: embedding gather / PE / outer LN / mask bias in JAX, layer stack in Pallas.
# -----------------------------------------------------------------------------
def encoder_forward(params, src_seq, src_mask, *, n_head, d_k, d_v, d_model,
                    n_layers, d_ffn, scale_emb=False):
    """src_seq: [S, B] int32 token ids; src_mask: [B, 1, S] float (1 keep, 0 pad).

    Returns [S, B, D] (module's seq-first convention)."""
    S, B = src_seq.shape
    D = d_model
    Hdk, Hdv = n_head * d_k, n_head * d_v

    # layer-0-only work, hoisted out of the kernel (per perf guidance): embedding
    # gather (data dependent), optional scale, positional encoding, outer LayerNorm.
    x = jnp.take(params["emb"], jnp.transpose(src_seq), axis=0)       # [B, S, D]
    if scale_emb:
        x = x * (float(d_model) ** 0.5)
    x = x + params["pe"][:S]                                          # PE broadcasts over B
    mean = jnp.mean(x, axis=-1, keepdims=True)
    var = jnp.mean(jnp.square(x - mean), axis=-1, keepdims=True)
    x0 = (x - mean) * jax.lax.rsqrt(var + LN_EPS) * params["ln_g"] + params["ln_b"]

    # additive key-padding bias, computed once (loop-invariant across layers)
    bias = (1.0 - src_mask.astype(jnp.float32)) * (-1e9)              # [B, 1, S]

    # batch block: keep grid[0] >= 2 so both v7x TensorCores are fed; for large B
    # pick Bb so Bb*S is a multiple of 256 (128 on v5e) to amortize per-step overhead.
    Bb = B // 2 if (B % 2 == 0 and B >= 2) else B
    grid = (B // Bb, n_layers)

    kern = functools.partial(encoder_kernel, n_head=n_head, d_k=d_k, d_v=d_v)

    per_layer3 = lambda bb, l: (l, 0, 0)     # stream per-layer weights
    per_batch3 = lambda bb, l: (bb, 0, 0)    # resident across the layer axis

    in_specs = [
        pl.BlockSpec((Bb, S, D), per_batch3),        # pre-normalized embeddings
        pl.BlockSpec((Bb, 1, S), per_batch3),        # additive key-padding bias
        pl.BlockSpec((1, D, Hdk), per_layer3),       # Wq (heads fused, pre-scaled)
        pl.BlockSpec((1, D, Hdk), per_layer3),       # Wk
        pl.BlockSpec((1, D, Hdv), per_layer3),       # Wv
        pl.BlockSpec((1, Hdv, D), per_layer3),       # Wo
        pl.BlockSpec((1, 1, D), per_layer3),         # bo
        pl.BlockSpec((1, 1, D), per_layer3),         # LN1 gamma
        pl.BlockSpec((1, 1, D), per_layer3),         # LN1 beta
        pl.BlockSpec((1, D, d_ffn), per_layer3),     # FFN W1
        pl.BlockSpec((1, 1, d_ffn), per_layer3),     # FFN b1
        pl.BlockSpec((1, d_ffn, D), per_layer3),     # FFN W2
        pl.BlockSpec((1, 1, D), per_layer3),         # FFN b2
        pl.BlockSpec((1, 1, D), per_layer3),         # LN2 gamma
        pl.BlockSpec((1, 1, D), per_layer3),         # LN2 beta
    ]

    out_bsd = pl.pallas_call(
        kern,
        grid=grid,
        in_specs=in_specs,
        out_specs=pl.BlockSpec((Bb, S, D), per_batch3),
        out_shape=jax.ShapeDtypeStruct((B, S, D), jnp.float32),
        scratch_shapes=[
            pltpu.VMEM((Bb * S, D), jnp.float32),        # resident activation
            pltpu.VMEM((Bb, S, Hdv), jnp.float32),       # per-layer head outputs
        ],
        compiler_params=pltpu.CompilerParams(
            dimension_semantics=("parallel", "arbitrary"),
            # safe on v5e/v6e/v7x; raise toward ~96 MiB on v5e/v6e for bigger Bb.
            vmem_limit_bytes=48 * 1024 * 1024),
    )(x0, bias,
      params["wq"], params["wk"], params["wv"], params["wo"], params["bo"],
      params["ln1_g"], params["ln1_b"], params["w1"], params["b1"],
      params["w2"], params["b2"], params["ln2_g"], params["ln2_b"])

    # Back to the module's seq-first [S, B, D] convention.  Kept outside the kernel:
    # with batch blocking (Bb < B), a seq-first output block would put Bb on the
    # second-to-last (sublane) dim, violating the (8,128)/full-dim block rule.
    return jnp.transpose(out_bsd, (1, 0, 2))


# -----------------------------------------------------------------------------
# Parameter construction (deterministic, synthetic)
# -----------------------------------------------------------------------------
def build_pe(max_len, d):
    position = jnp.arange(max_len, dtype=jnp.float32)[:, None]
    div_term = jnp.exp(jnp.arange(0, d, 2, dtype=jnp.float32) * (-math.log(10000.0) / d))
    ang = position * div_term
    pe = jnp.zeros((max_len, d), jnp.float32)
    pe = pe.at[:, 0::2].set(jnp.sin(ang))
    pe = pe.at[:, 1::2].set(jnp.cos(ang))
    return pe


def init_params(key, *, vocab, d_model, n_layers, n_head, d_k, d_v, d_ffn,
                pad_index, max_len):
    ks = jax.random.split(key, 7)
    emb = 0.02 * jax.random.normal(ks[0], (vocab, d_model), jnp.float32)
    emb = emb.at[pad_index].set(0.0)                 # nn.Embedding padding_idx row
    Hdk, Hdv = n_head * d_k, n_head * d_v
    L = n_layers

    def w(k, shape, scale=0.1):
        # matmul weights in bf16 (MXU operands); accumulation stays f32 in-kernel
        return (scale * jax.random.normal(k, shape, jnp.float32)).astype(jnp.bfloat16)

    # 1/sqrt(d_k) attention scale folded into Wq (equivalent by linearity).
    wq = (0.1 / math.sqrt(d_k)) * jax.random.normal(ks[1], (L, d_model, Hdk), jnp.float32)

    return {
        "emb": emb,
        "pe": build_pe(max_len, d_model),            # [max_len, D]
        "ln_g": jnp.ones((d_model,), jnp.float32),
        "ln_b": jnp.zeros((d_model,), jnp.float32),
        "wq": wq.astype(jnp.bfloat16),
        "wk": w(ks[2], (L, d_model, Hdk)),
        "wv": w(ks[3], (L, d_model, Hdv)),
        "wo": w(ks[4], (L, Hdv, d_model)),
        "bo": jnp.zeros((L, 1, d_model), jnp.float32),
        "ln1_g": jnp.ones((L, 1, d_model), jnp.float32),
        "ln1_b": jnp.zeros((L, 1, d_model), jnp.float32),
        "w1": w(ks[5], (L, d_model, d_ffn)),
        "b1": jnp.zeros((L, 1, d_ffn), jnp.float32),
        "w2": w(ks[6], (L, d_ffn, d_model)),
        "b2": jnp.zeros((L, 1, d_model), jnp.float32),
        "ln2_g": jnp.ones((L, 1, d_model), jnp.float32),
        "ln2_b": jnp.zeros((L, 1, d_model), jnp.float32),
    }


if __name__ == "__main__":
    # small, module-consistent shapes (toy D=32 under-fills lanes; real configs
    # should keep D, H*dk, H*dv, d_ffn multiples of 128 for lane-dense MXU tiles)
    B, S = 2, 8
    VOCAB, D_MODEL = 50, 32          # d_embedding == d_model
    N_LAYERS, N_HEAD, D_K, D_V, D_FFN = 2, 2, 16, 16, 64
    PAD = 0
    MAX_LEN = 64

    root = jax.random.PRNGKey(0)
    k_param, k_seq = jax.random.split(root)

    params = init_params(k_param, vocab=VOCAB, d_model=D_MODEL, n_layers=N_LAYERS,
                         n_head=N_HEAD, d_k=D_K, d_v=D_V, d_ffn=D_FFN,
                         pad_index=PAD, max_len=MAX_LEN)

    # src_seq is [S, B] (seq-first, matching PositionalEncoding's convention)
    src_seq = jax.random.randint(k_seq, (S, B), 1, VOCAB, dtype=jnp.int32)
    src_seq = src_seq.at[-2:, 1].set(PAD)            # make batch 1 ragged (pads)

    # key-padding mask: [B, 1, S], 1.0 = attend, 0.0 = pad
    src_mask = (src_seq.T != PAD).astype(jnp.float32)[:, None, :]

    # TODO(synk): dropout layers are identity here (inference/eval mode).
    out = encoder_forward(params, src_seq, src_mask,
                          n_head=N_HEAD, d_k=D_K, d_v=D_V, d_model=D_MODEL,
                          n_layers=N_LAYERS, d_ffn=D_FFN, scale_emb=False)
    out = jax.block_until_ready(out)
    assert out.shape == (S, B, D_MODEL)
    assert bool(jnp.all(jnp.isfinite(out)))
    print("KERNEL_OK")
</pallas_src>

<mosaic_0001>
module attributes {stable_mosaic.version = 11 : i64} {
  func.func @encoder_kernel(%arg0: i32, %arg1: i32, %arg2: memref<1x8x32xf32, #tpu.memory_space<vmem>>, %arg3: memref<1x1x8xf32, #tpu.memory_space<vmem>>, %arg4: memref<1x32x32xbf16, #tpu.memory_space<vmem>>, %arg5: memref<1x32x32xbf16, #tpu.memory_space<vmem>>, %arg6: memref<1x32x32xbf16, #tpu.memory_space<vmem>>, %arg7: memref<1x32x32xbf16, #tpu.memory_space<vmem>>, %arg8: memref<1x1x32xf32, #tpu.memory_space<vmem>>, %arg9: memref<1x1x32xf32, #tpu.memory_space<vmem>>, %arg10: memref<1x1x32xf32, #tpu.memory_space<vmem>>, %arg11: memref<1x32x64xbf16, #tpu.memory_space<vmem>>, %arg12: memref<1x1x64xf32, #tpu.memory_space<vmem>>, %arg13: memref<1x64x32xbf16, #tpu.memory_space<vmem>>, %arg14: memref<1x1x32xf32, #tpu.memory_space<vmem>>, %arg15: memref<1x1x32xf32, #tpu.memory_space<vmem>>, %arg16: memref<1x1x32xf32, #tpu.memory_space<vmem>>, %arg17: memref<1x8x32xf32, #tpu.memory_space<vmem>>, %arg18: memref<8x32xf32, #tpu.memory_space<vmem>>, %arg19: memref<1x8x32xf32, #tpu.memory_space<vmem>>) attributes {dimension_semantics = [#tpu.dimension_semantics<parallel>, #tpu.dimension_semantics<arbitrary>], iteration_bounds = array<i64: 2, 2>, scalar_prefetch = 0 : i64, scratch_operands = 2 : i64, tpu.core_type = #tpu.core_type<tc>, window_params = [{transform_indices = @transform_0, window_bounds = array<i64: 1, 8, 32>}, {transform_indices = @transform_1, window_bounds = array<i64: 1, 1, 8>}, {transform_indices = @transform_2, window_bounds = array<i64: 1, 32, 32>}, {transform_indices = @transform_3, window_bounds = array<i64: 1, 32, 32>}, {transform_indices = @transform_4, window_bounds = array<i64: 1, 32, 32>}, {transform_indices = @transform_5, window_bounds = array<i64: 1, 32, 32>}, {transform_indices = @transform_6, window_bounds = array<i64: 1, 1, 32>}, {transform_indices = @transform_7, window_bounds = array<i64: 1, 1, 32>}, {transform_indices = @transform_8, window_bounds = array<i64: 1, 1, 32>}, {transform_indices = @transform_9, window_bounds = array<i64: 1, 32, 64>}, {transform_indices = @transform_10, window_bounds = array<i64: 1, 1, 64>}, {transform_indices = @transform_11, window_bounds = array<i64: 1, 64, 32>}, {transform_indices = @transform_12, window_bounds = array<i64: 1, 1, 32>}, {transform_indices = @transform_13, window_bounds = array<i64: 1, 1, 32>}, {transform_indices = @transform_14, window_bounds = array<i64: 1, 1, 32>}, {transform_indices = @transform_15, window_bounds = array<i64: 1, 8, 32>}]} {
    %c0_i32 = arith.constant 0 : i32
    %0 = arith.cmpi eq, %arg1, %c0_i32 : i32
    %1 = arith.extui %0 : i1 to i32
    %c0_i32_0 = arith.constant 0 : i32
    %2 = arith.cmpi ne, %1, %c0_i32_0 : i32
    scf.if %2 {
      %c0_79 = arith.constant 0 : index
      %c0_80 = arith.constant 0 : index
      %c0_81 = arith.constant 0 : index
      %145 = vector.load %arg2[%c0_79, %c0_80, %c0_81] : memref<1x8x32xf32, #tpu.memory_space<vmem>>, vector<1x8x32xf32>
      %146 = vector.shape_cast %145 : vector<1x8x32xf32> to vector<8x32xf32>
      %c0_82 = arith.constant 0 : index
      %c0_83 = arith.constant 0 : index
      %147 = vector.load %arg18[%c0_82, %c0_83] : memref<8x32xf32, #tpu.memory_space<vmem>>, vector<8x32xf32>
      tpu.vector_store %arg18[%c0_82, %c0_83], %146 {strides = array<i32>} : memref<8x32xf32, #tpu.memory_space<vmem>>, vector<8x32xf32>,
    } else {
    }
    %c0 = arith.constant 0 : index
    %c0_1 = arith.constant 0 : index
    %3 = vector.load %arg18[%c0, %c0_1] : memref<8x32xf32, #tpu.memory_space<vmem>>, vector<8x32xf32>
    %4 = arith.truncf %3 : vector<8x32xf32> to vector<8x32xbf16>
    %c0_2 = arith.constant 0 : index
    %c0_3 = arith.constant 0 : index
    %c0_4 = arith.constant 0 : index
    %5 = vector.load %arg4[%c0_2, %c0_3, %c0_4] : memref<1x32x32xbf16, #tpu.memory_space<vmem>>, vector<1x32x32xbf16>
    %6 = vector.shape_cast %5 : vector<1x32x32xbf16> to vector<32x32xbf16>
    %cst = arith.constant dense<0.000000e+00> : vector<8x32xf32>
    %7 = tpu.matmul %4, %6, %cst {dimension_numbers = #tpu.dot_dimension_numbers<[1], [0], [0], [1], [0, 0, 1, 1], [], []>} : vector<8x32xbf16>, vector<32x32xbf16>, vector<8x32xf32> -> vector<8x32xf32>
    %8 = arith.truncf %7 : vector<8x32xf32> to vector<8x32xbf16>
    %c0_5 = arith.constant 0 : index
    %c0_6 = arith.constant 0 : index
    %c0_7 = arith.constant 0 : index
    %9 = vector.load %arg5[%c0_5, %c0_6, %c0_7] : memref<1x32x32xbf16, #tpu.memory_space<vmem>>, vector<1x32x32xbf16>
    %10 = vector.shape_cast %9 : vector<1x32x32xbf16> to vector<32x32xbf16>
    %cst_8 = arith.constant dense<0.000000e+00> : vector<8x32xf32>
    %11 = tpu.matmul %4, %10, %cst_8 {dimension_numbers = #tpu.dot_dimension_numbers<[1], [0], [0], [1], [0, 0, 1, 1], [], []>} : vector<8x32xbf16>, vector<32x32xbf16>, vector<8x32xf32> -> vector<8x32xf32>
    %12 = arith.truncf %11 : vector<8x32xf32> to vector<8x32xbf16>
    %c0_9 = arith.constant 0 : index
    %c0_10 = arith.constant 0 : index
    %c0_11 = arith.constant 0 : index
    %13 = vector.load %arg6[%c0_9, %c0_10, %c0_11] : memref<1x32x32xbf16, #tpu.memory_space<vmem>>, vector<1x32x32xbf16>
    %14 = vector.shape_cast %13 : vector<1x32x32xbf16> to vector<32x32xbf16>
    %cst_12 = arith.constant dense<0.000000e+00> : vector<8x32xf32>
    %15 = tpu.matmul %4, %14, %cst_12 {dimension_numbers = #tpu.dot_dimension_numbers<[1], [0], [0], [1], [0, 0, 1, 1], [], []>} : vector<8x32xbf16>, vector<32x32xbf16>, vector<8x32xf32> -> vector<8x32xf32>
    %16 = arith.truncf %15 : vector<8x32xf32> to vector<8x32xbf16>
    %17 = vector.shape_cast %8 : vector<8x32xbf16> to vector<1x8x32xbf16>
    %18 = vector.shape_cast %12 : vector<8x32xbf16> to vector<1x8x32xbf16>
    %19 = vector.shape_cast %16 : vector<8x32xbf16> to vector<1x8x32xbf16>
    %c0_13 = arith.constant 0 : index
    %c0_14 = arith.constant 0 : index
    %c0_15 = arith.constant 0 : index
    %20 = vector.load %arg3[%c0_13, %c0_14, %c0_15] : memref<1x1x8xf32, #tpu.memory_space<vmem>>, vector<1x1x8xf32>
    %21 = vector.extract_strided_slice %17 {offsets = [0, 0, 0], sizes = [1, 8, 16], strides = [1, 1, 1]} : vector<1x8x32xbf16> to vector<1x8x16xbf16>
    %22 = vector.extract_strided_slice %18 {offsets = [0, 0, 0], sizes = [1, 8, 16], strides = [1, 1, 1]} : vector<1x8x32xbf16> to vector<1x8x16xbf16>
    %23 = vector.extract_strided_slice %19 {offsets = [0, 0, 0], sizes = [1, 8, 16], strides = [1, 1, 1]} : vector<1x8x32xbf16> to vector<1x8x16xbf16>
    "tpu.trace_start"() <{level = 10 : i32, message = "bqd,bkd->bqk"}> : () -> ()
    %cst_16 = arith.constant dense<0.000000e+00> : vector<1x8x8xf32>
    %24 = tpu.matmul %21, %22, %cst_16 {dimension_numbers = #tpu.dot_dimension_numbers<[2], [2], [1], [1], [0, 0, 0, 1, 1, 1], [0], [0]>} : vector<1x8x16xbf16>, vector<1x8x16xbf16>, vector<1x8x8xf32> -> vector<1x8x8xf32>
    "tpu.trace_stop"() : () -> ()
    %25 = vector.broadcast %20 : vector<1x1x8xf32> to vector<1x8x8xf32>
    %26 = arith.addf %24, %25 : vector<1x8x8xf32>
    %cst_17 = arith.constant dense<0xFF800000> : vector<1x8xf32>
    %27 = vector.multi_reduction <maximumf>, %26, %cst_17 [2] : vector<1x8x8xf32> to vector<1x8xf32>
    %28 = vector.shape_cast %27 : vector<1x8xf32> to vector<1x8x1xf32>
    %29 = vector.broadcast %28 : vector<1x8x1xf32> to vector<1x8x8xf32>
    %30 = arith.subf %26, %29 : vector<1x8x8xf32>
    %31 = math.exp %30 : vector<1x8x8xf32>
    %cst_18 = arith.constant dense<0.000000e+00> : vector<1x8xf32>
    %32 = vector.multi_reduction <add>, %31, %cst_18 [2] : vector<1x8x8xf32> to vector<1x8xf32>
    %33 = vector.shape_cast %32 : vector<1x8xf32> to vector<1x8x1xf32>
    %34 = tpu.reciprocal %33 {approx = true} : vector<1x8x1xf32> -> vector<1x8x1xf32>
    %35 = vector.broadcast %34 : vector<1x8x1xf32> to vector<1x8x8xf32>
    %36 = arith.mulf %31, %35 : vector<1x8x8xf32>
    %37 = arith.truncf %36 : vector<1x8x8xf32> to vector<1x8x8xbf16>
    "tpu.trace_start"() <{level = 10 : i32, message = "bqk,bkd->bqd"}> : () -> ()
    %cst_19 = arith.constant dense<0.000000e+00> : vector<1x8x16xf32>
    %38 = tpu.matmul %37, %23, %cst_19 {dimension_numbers = #tpu.dot_dimension_numbers<[2], [1], [1], [2], [0, 0, 0, 1, 1, 2], [0], [0]>} : vector<1x8x8xbf16>, vector<1x8x16xbf16>, vector<1x8x16xf32> -> vector<1x8x16xf32>
    "tpu.trace_stop"() : () -> ()
    %c0_20 = arith.constant 0 : index
    %c0_21 = arith.constant 0 : index
    %c0_22 = arith.constant 0 : index
    %39 = vector.load %arg19[%c0_20, %c0_21, %c0_22] : memref<1x8x32xf32, #tpu.memory_space<vmem>>, vector<1x8x16xf32>
    tpu.vector_store %arg19[%c0_20, %c0_21, %c0_22], %38 {strides = array<i32>} : memref<1x8x32xf32, #tpu.memory_space<vmem>>, vector<1x8x16xf32>,
    %40 = vector.extract_strided_slice %17 {offsets = [0, 0, 16], sizes = [1, 8, 16], strides = [1, 1, 1]} : vector<1x8x32xbf16> to vector<1x8x16xbf16>
    %41 = vector.extract_strided_slice %18 {offsets = [0, 0, 16], sizes = [1, 8, 16], strides = [1, 1, 1]} : vector<1x8x32xbf16> to vector<1x8x16xbf16>
    %42 = vector.extract_strided_slice %19 {offsets = [0, 0, 16], sizes = [1, 8, 16], strides = [1, 1, 1]} : vector<1x8x32xbf16> to vector<1x8x16xbf16>
    "tpu.trace_start"() <{level = 10 : i32, message = "bqd,bkd->bqk"}> : () -> ()
    %cst_23 = arith.constant dense<0.000000e+00> : vector<1x8x8xf32>
    %43 = tpu.matmul %40, %41, %cst_23 {dimension_numbers = #tpu.dot_dimension_numbers<[2], [2], [1], [1], [0, 0, 0, 1, 1, 1], [0], [0]>} : vector<1x8x16xbf16>, vector<1x8x16xbf16>, vector<1x8x8xf32> -> vector<1x8x8xf32>
    "tpu.trace_stop"() : () -> ()
    %44 = vector.broadcast %20 : vector<1x1x8xf32> to vector<1x8x8xf32>
    %45 = arith.addf %43, %44 : vector<1x8x8xf32>
    %cst_24 = arith.constant dense<0xFF800000> : vector<1x8xf32>
    %46 = vector.multi_reduction <maximumf>, %45, %cst_24 [2] : vector<1x8x8xf32> to vector<1x8xf32>
    %47 = vector.shape_cast %46 : vector<1x8xf32> to vector<1x8x1xf32>
    %48 = vector.broadcast %47 : vector<1x8x1xf32> to vector<1x8x8xf32>
    %49 = arith.subf %45, %48 : vector<1x8x8xf32>
    %50 = math.exp %49 : vector<1x8x8xf32>
    %cst_25 = arith.constant dense<0.000000e+00> : vector<1x8xf32>
    %51 = vector.multi_reduction <add>, %50, %cst_25 [2] : vector<1x8x8xf32> to vector<1x8xf32>
    %52 = vector.shape_cast %51 : vector<1x8xf32> to vector<1x8x1xf32>
    %53 = tpu.reciprocal %52 {approx = true} : vector<1x8x1xf32> -> vector<1x8x1xf32>
    %54 = vector.broadcast %53 : vector<1x8x1xf32> to vector<1x8x8xf32>
    %55 = arith.mulf %50, %54 : vector<1x8x8xf32>
    %56 = arith.truncf %55 : vector<1x8x8xf32> to vector<1x8x8xbf16>
    "tpu.trace_start"() <{level = 10 : i32, message = "bqk,bkd->bqd"}> : () -> ()
    %cst_26 = arith.constant dense<0.000000e+00> : vector<1x8x16xf32>
    %57 = tpu.matmul %56, %42, %cst_26 {dimension_numbers = #tpu.dot_dimension_numbers<[2], [1], [1], [2], [0, 0, 0, 1, 1, 2], [0], [0]>} : vector<1x8x8xbf16>, vector<1x8x16xbf16>, vector<1x8x16xf32> -> vector<1x8x16xf32>
    "tpu.trace_stop"() : () -> ()
    %c0_27 = arith.constant 0 : index
    %c0_28 = arith.constant 0 : index
    %c16 = arith.constant 16 : index
    %58 = vector.load %arg19[%c0_27, %c0_28, %c16] : memref<1x8x32xf32, #tpu.memory_space<vmem>>, vector<1x8x16xf32>
    tpu.vector_store %arg19[%c0_27, %c0_28, %c16], %57 {strides = array<i32>} : memref<1x8x32xf32, #tpu.memory_space<vmem>>, vector<1x8x16xf32>,
    %c0_29 = arith.constant 0 : index
    %c0_30 = arith.constant 0 : index
    %c0_31 = arith.constant 0 : index
    %59 = vector.load %arg19[%c0_29, %c0_30, %c0_31] : memref<1x8x32xf32, #tpu.memory_space<vmem>>, vector<1x8x32xf32>
    %60 = vector.shape_cast %59 : vector<1x8x32xf32> to vector<8x32xf32>
    %61 = arith.truncf %60 : vector<8x32xf32> to vector<8x32xbf16>
    %c0_32 = arith.constant 0 : index
    %c0_33 = arith.constant 0 : index
    %c0_34 = arith.constant 0 : index
    %62 = vector.load %arg7[%c0_32, %c0_33, %c0_34] : memref<1x32x32xbf16, #tpu.memory_space<vmem>>, vector<1x32x32xbf16>
    %63 = vector.shape_cast %62 : vector<1x32x32xbf16> to vector<32x32xbf16>
    %cst_35 = arith.constant dense<0.000000e+00> : vector<8x32xf32>
    %64 = tpu.matmul %61, %63, %cst_35 {dimension_numbers = #tpu.dot_dimension_numbers<[1], [0], [0], [1], [0, 0, 1, 1], [], []>} : vector<8x32xbf16>, vector<32x32xbf16>, vector<8x32xf32> -> vector<8x32xf32>
    %c0_36 = arith.constant 0 : index
    %c0_37 = arith.constant 0 : index
    %c0_38 = arith.constant 0 : index
    %65 = vector.load %arg8[%c0_36, %c0_37, %c0_38] : memref<1x1x32xf32, #tpu.memory_space<vmem>>, vector<1x1x32xf32>
    %66 = vector.shape_cast %65 : vector<1x1x32xf32> to vector<1x32xf32>
    %67 = vector.broadcast %66 : vector<1x32xf32> to vector<8x32xf32>
    %68 = arith.addf %64, %67 : vector<8x32xf32>
    %69 = arith.addf %68, %3 : vector<8x32xf32>
    %c0_39 = arith.constant 0 : index
    %c0_40 = arith.constant 0 : index
    %c0_41 = arith.constant 0 : index
    %70 = vector.load %arg9[%c0_39, %c0_40, %c0_41] : memref<1x1x32xf32, #tpu.memory_space<vmem>>, vector<1x1x32xf32>
    %71 = vector.shape_cast %70 : vector<1x1x32xf32> to vector<1x32xf32>
    %c0_42 = arith.constant 0 : index
    %c0_43 = arith.constant 0 : index
    %c0_44 = arith.constant 0 : index
    %72 = vector.load %arg10[%c0_42, %c0_43, %c0_44] : memref<1x1x32xf32, #tpu.memory_space<vmem>>, vector<1x1x32xf32>
    %73 = vector.shape_cast %72 : vector<1x1x32xf32> to vector<1x32xf32>
    %cst_45 = arith.constant dense<0.000000e+00> : vector<8xf32>
    %74 = vector.multi_reduction <add>, %69, %cst_45 [1] : vector<8x32xf32> to vector<8xf32>
    %75 = vector.shape_cast %74 : vector<8xf32> to vector<8x1xf32>
    %cst_46 = arith.constant 3.200000e+01 : f32
    %76 = vector.broadcast %cst_46 : f32 to vector<8x1xf32>
    %77 = arith.divf %75, %76 : vector<8x1xf32>
    %78 = vector.broadcast %77 : vector<8x1xf32> to vector<8x32xf32>
    %79 = arith.subf %69, %78 : vector<8x32xf32>
    %80 = arith.mulf %79, %79 : vector<8x32xf32>
    %cst_47 = arith.constant dense<0.000000e+00> : vector<8xf32>
    %81 = vector.multi_reduction <add>, %80, %cst_47 [1] : vector<8x32xf32> to vector<8xf32>
    %82 = vector.shape_cast %81 : vector<8xf32> to vector<8x1xf32>
    %cst_48 = arith.constant 3.200000e+01 : f32
    %83 = vector.broadcast %cst_48 : f32 to vector<8x1xf32>
    %84 = arith.divf %82, %83 : vector<8x1xf32>
    %85 = vector.broadcast %77 : vector<8x1xf32> to vector<8x32xf32>
    %86 = arith.subf %69, %85 : vector<8x32xf32>
    %cst_49 = arith.constant 9.99999997E-7 : f32
    %87 = vector.broadcast %cst_49 : f32 to vector<8x1xf32>
    %88 = arith.addf %84, %87 : vector<8x1xf32>
    %89 = math.rsqrt %88 : vector<8x1xf32>
    %90 = vector.broadcast %89 : vector<8x1xf32> to vector<8x32xf32>
    %91 = arith.mulf %86, %90 : vector<8x32xf32>
    %92 = vector.broadcast %71 : vector<1x32xf32> to vector<8x32xf32>
    %93 = arith.mulf %91, %92 : vector<8x32xf32>
    %94 = vector.broadcast %73 : vector<1x32xf32> to vector<8x32xf32>
    %95 = arith.addf %93, %94 : vector<8x32xf32>
    %96 = arith.truncf %95 : vector<8x32xf32> to vector<8x32xbf16>
    %c0_50 = arith.constant 0 : index
    %c0_51 = arith.constant 0 : index
    %c0_52 = arith.constant 0 : index
    %97 = vector.load %arg11[%c0_50, %c0_51, %c0_52] : memref<1x32x64xbf16, #tpu.memory_space<vmem>>, vector<1x32x64xbf16>
    %98 = vector.shape_cast %97 : vector<1x32x64xbf16> to vector<32x64xbf16>
    %cst_53 = arith.constant dense<0.000000e+00> : vector<8x64xf32>
    %99 = tpu.matmul %96, %98, %cst_53 {dimension_numbers = #tpu.dot_dimension_numbers<[1], [0], [0], [1], [0, 0, 1, 1], [], []>} : vector<8x32xbf16>, vector<32x64xbf16>, vector<8x64xf32> -> vector<8x64xf32>
    %c0_54 = arith.constant 0 : index
    %c0_55 = arith.constant 0 : index
    %c0_56 = arith.constant 0 : index
    %100 = vector.load %arg12[%c0_54, %c0_55, %c0_56] : memref<1x1x64xf32, #tpu.memory_space<vmem>>, vector<1x1x64xf32>
    %101 = vector.shape_cast %100 : vector<1x1x64xf32> to vector<1x64xf32>
    %102 = vector.broadcast %101 : vector<1x64xf32> to vector<8x64xf32>
    %103 = arith.addf %99, %102 : vector<8x64xf32>
    %cst_57 = arith.constant 0.000000e+00 : f32
    %104 = vector.broadcast %cst_57 : f32 to vector<8x64xf32>
    %105 = arith.maximumf %103, %104 : vector<8x64xf32>
    %106 = arith.truncf %105 : vector<8x64xf32> to vector<8x64xbf16>
    %c0_58 = arith.constant 0 : index
    %c0_59 = arith.constant 0 : index
    %c0_60 = arith.constant 0 : index
    %107 = vector.load %arg13[%c0_58, %c0_59, %c0_60] : memref<1x64x32xbf16, #tpu.memory_space<vmem>>, vector<1x64x32xbf16>
    %108 = vector.shape_cast %107 : vector<1x64x32xbf16> to vector<64x32xbf16>
    %cst_61 = arith.constant dense<0.000000e+00> : vector<8x32xf32>
    %109 = tpu.matmul %106, %108, %cst_61 {dimension_numbers = #tpu.dot_dimension_numbers<[1], [0], [0], [1], [0, 0, 1, 1], [], []>} : vector<8x64xbf16>, vector<64x32xbf16>, vector<8x32xf32> -> vector<8x32xf32>
    %c0_62 = arith.constant 0 : index
    %c0_63 = arith.constant 0 : index
    %c0_64 = arith.constant 0 : index
    %110 = vector.load %arg14[%c0_62, %c0_63, %c0_64] : memref<1x1x32xf32, #tpu.memory_space<vmem>>, vector<1x1x32xf32>
    %111 = vector.shape_cast %110 : vector<1x1x32xf32> to vector<1x32xf32>
    %112 = vector.broadcast %111 : vector<1x32xf32> to vector<8x32xf32>
    %113 = arith.addf %109, %112 : vector<8x32xf32>
    %114 = arith.addf %113, %95 : vector<8x32xf32>
    %c0_65 = arith.constant 0 : index
    %c0_66 = arith.constant 0 : index
    %c0_67 = arith.constant 0 : index
    %115 = vector.load %arg15[%c0_65, %c0_66, %c0_67] : memref<1x1x32xf32, #tpu.memory_space<vmem>>, vector<1x1x32xf32>
    %116 = vector.shape_cast %115 : vector<1x1x32xf32> to vector<1x32xf32>
    %c0_68 = arith.constant 0 : index
    %c0_69 = arith.constant 0 : index
    %c0_70 = arith.constant 0 : index
    %117 = vector.load %arg16[%c0_68, %c0_69, %c0_70] : memref<1x1x32xf32, #tpu.memory_space<vmem>>, vector<1x1x32xf32>
    %118 = vector.shape_cast %117 : vector<1x1x32xf32> to vector<1x32xf32>
    %cst_71 = arith.constant dense<0.000000e+00> : vector<8xf32>
    %119 = vector.multi_reduction <add>, %114, %cst_71 [1] : vector<8x32xf32> to vector<8xf32>
    %120 = vector.shape_cast %119 : vector<8xf32> to vector<8x1xf32>
    %cst_72 = arith.constant 3.200000e+01 : f32
    %121 = vector.broadcast %cst_72 : f32 to vector<8x1xf32>
    %122 = arith.divf %120, %121 : vector<8x1xf32>
    %123 = vector.broadcast %122 : vector<8x1xf32> to vector<8x32xf32>
    %124 = arith.subf %114, %123 : vector<8x32xf32>
    %125 = arith.mulf %124, %124 : vector<8x32xf32>
    %cst_73 = arith.constant dense<0.000000e+00> : vector<8xf32>
    %126 = vector.multi_reduction <add>, %125, %cst_73 [1] : vector<8x32xf32> to vector<8xf32>
    %127 = vector.shape_cast %126 : vector<8xf32> to vector<8x1xf32>
    %cst_74 = arith.constant 3.200000e+01 : f32
    %128 = vector.broadcast %cst_74 : f32 to vector<8x1xf32>
    %129 = arith.divf %127, %128 : vector<8x1xf32>
    %130 = vector.broadcast %122 : vector<8x1xf32> to vector<8x32xf32>
    %131 = arith.subf %114, %130 : vector<8x32xf32>
    %cst_75 = arith.constant 9.99999997E-7 : f32
    %132 = vector.broadcast %cst_75 : f32 to vector<8x1xf32>
    %133 = arith.addf %129, %132 : vector<8x1xf32>
    %134 = math.rsqrt %133 : vector<8x1xf32>
    %135 = vector.broadcast %134 : vector<8x1xf32> to vector<8x32xf32>
    %136 = arith.mulf %131, %135 : vector<8x32xf32>
    %137 = vector.broadcast %116 : vector<1x32xf32> to vector<8x32xf32>
    %138 = arith.mulf %136, %137 : vector<8x32xf32>
    %139 = vector.broadcast %118 : vector<1x32xf32> to vector<8x32xf32>
    %140 = arith.addf %138, %139 : vector<8x32xf32>
    %c0_76 = arith.constant 0 : index
    %c0_77 = arith.constant 0 : index
    %141 = vector.load %arg18[%c0_76, %c0_77] : memref<8x32xf32, #tpu.memory_space<vmem>>, vector<8x32xf32>
    tpu.vector_store %arg18[%c0_76, %c0_77], %140 {strides = array<i32>} : memref<8x32xf32, #tpu.memory_space<vmem>>, vector<8x32xf32>,
    %c1_i32 = arith.constant 1 : i32
    %142 = arith.cmpi eq, %arg1, %c1_i32 : i32
    %143 = arith.extui %142 : i1 to i32
    %c0_i32_78 = arith.constant 0 : i32
    %144 = arith.cmpi ne, %143, %c0_i32_78 : i32
    scf.if %144 {
      %145 = vector.shape_cast %140 : vector<8x32xf32> to vector<1x8x32xf32>
      %c0_79 = arith.constant 0 : index
      %c0_80 = arith.constant 0 : index
      %c0_81 = arith.constant 0 : index
      %146 = vector.load %arg17[%c0_79, %c0_80, %c0_81] : memref<1x8x32xf32, #tpu.memory_space<vmem>>, vector<1x8x32xf32>
      tpu.vector_store %arg17[%c0_79, %c0_80, %c0_81], %145 {strides = array<i32>} : memref<1x8x32xf32, #tpu.memory_space<vmem>>, vector<1x8x32xf32>,
    } else {
    }
    return
  }
  func.func @transform_0(%arg0: i32, %arg1: i32) -> (i32, i32, i32) {
    %c0_i32 = arith.constant 0 : i32
    %c0_i32_0 = arith.constant 0 : i32
    %c0_i32_1 = arith.constant 0 : i32
    return %arg0, %c0_i32, %c0_i32_0 : i32, i32, i32
  }
  func.func @transform_1(%arg0: i32, %arg1: i32) -> (i32, i32, i32) {
    %c0_i32 = arith.constant 0 : i32
    %c0_i32_0 = arith.constant 0 : i32
    %c0_i32_1 = arith.constant 0 : i32
    return %arg0, %c0_i32, %c0_i32_0 : i32, i32, i32
  }
  func.func @transform_2(%arg0: i32, %arg1: i32) -> (i32, i32, i32) {
    %c0_i32 = arith.constant 0 : i32
    %c0_i32_0 = arith.constant 0 : i32
    %c0_i32_1 = arith.constant 0 : i32
    return %arg1, %c0_i32, %c0_i32_0 : i32, i32, i32
  }
  func.func @transform_3(%arg0: i32, %arg1: i32) -> (i32, i32, i32) {
    %c0_i32 = arith.constant 0 : i32
    %c0_i32_0 = arith.constant 0 : i32
    %c0_i32_1 = arith.constant 0 : i32
    return %arg1, %c0_i32, %c0_i32_0 : i32, i32, i32
  }
  func.func @transform_4(%arg0: i32, %arg1: i32) -> (i32, i32, i32) {
    %c0_i32 = arith.constant 0 : i32
    %c0_i32_0 = arith.constant 0 : i32
    %c0_i32_1 = arith.constant 0 : i32
    return %arg1, %c0_i32, %c0_i32_0 : i32, i32, i32
  }
  func.func @transform_5(%arg0: i32, %arg1: i32) -> (i32, i32, i32) {
    %c0_i32 = arith.constant 0 : i32
    %c0_i32_0 = arith.constant 0 : i32
    %c0_i32_1 = arith.constant 0 : i32
    return %arg1, %c0_i32, %c0_i32_0 : i32, i32, i32
  }
  func.func @transform_6(%arg0: i32, %arg1: i32) -> (i32, i32, i32) {
    %c0_i32 = arith.constant 0 : i32
    %c0_i32_0 = arith.constant 0 : i32
    %c0_i32_1 = arith.constant 0 : i32
    return %arg1, %c0_i32, %c0_i32_0 : i32, i32, i32
  }
  func.func @transform_7(%arg0: i32, %arg1: i32) -> (i32, i32, i32) {
    %c0_i32 = arith.constant 0 : i32
    %c0_i32_0 = arith.constant 0 : i32
    %c0_i32_1 = arith.constant 0 : i32
    return %arg1, %c0_i32, %c0_i32_0 : i32, i32, i32
  }
  func.func @transform_8(%arg0: i32, %arg1: i32) -> (i32, i32, i32) {
    %c0_i32 = arith.constant 0 : i32
    %c0_i32_0 = arith.constant 0 : i32
    %c0_i32_1 = arith.constant 0 : i32
    return %arg1, %c0_i32, %c0_i32_0 : i32, i32, i32
  }
  func.func @transform_9(%arg0: i32, %arg1: i32) -> (i32, i32, i32) {
    %c0_i32 = arith.constant 0 : i32
    %c0_i32_0 = arith.constant 0 : i32
    %c0_i32_1 = arith.constant 0 : i32
    return %arg1, %c0_i32, %c0_i32_0 : i32, i32, i32
  }
  func.func @transform_10(%arg0: i32, %arg1: i32) -> (i32, i32, i32) {
    %c0_i32 = arith.constant 0 : i32
    %c0_i32_0 = arith.constant 0 : i32
    %c0_i32_1 = arith.constant 0 : i32
    return %arg1, %c0_i32, %c0_i32_0 : i32, i32, i32
  }
  func.func @transform_11(%arg0: i32, %arg1: i32) -> (i32, i32, i32) {
    %c0_i32 = arith.constant 0 : i32
    %c0_i32_0 = arith.constant 0 : i32
    %c0_i32_1 = arith.constant 0 : i32
    return %arg1, %c0_i32, %c0_i32_0 : i32, i32, i32
  }
  func.func @transform_12(%arg0: i32, %arg1: i32) -> (i32, i32, i32) {
    %c0_i32 = arith.constant 0 : i32
    %c0_i32_0 = arith.constant 0 : i32
    %c0_i32_1 = arith.constant 0 : i32
    return %arg1, %c0_i32, %c0_i32_0 : i32, i32, i32
  }
  func.func @transform_13(%arg0: i32, %arg1: i32) -> (i32, i32, i32) {
    %c0_i32 = arith.constant 0 : i32
    %c0_i32_0 = arith.constant 0 : i32
    %c0_i32_1 = arith.constant 0 : i32
    return %arg1, %c0_i32, %c0_i32_0 : i32, i32, i32
  }
  func.func @transform_14(%arg0: i32, %arg1: i32) -> (i32, i32, i32) {
    %c0_i32 = arith.constant 0 : i32
    %c0_i32_0 = arith.constant 0 : i32
    %c0_i32_1 = arith.constant 0 : i32
    return %arg1, %c0_i32, %c0_i32_0 : i32, i32, i32
  }
  func.func @transform_15(%arg0: i32, %arg1: i32) -> (i32, i32, i32) {
    %c0_i32 = arith.constant 0 : i32
    %c0_i32_0 = arith.constant 0 : i32
    %c0_i32_1 = arith.constant 0 : i32
    return %arg0, %c0_i32, %c0_i32_0 : i32, i32, i32
  }
}

</mosaic_0001>

<llo_original>
// kernel: tpu_custom_call.1
$region0: #{tpu_custom_call.1}
  #allocation0 [shape = 'u32[]', space=smem, size = 0x4, offset = 0x4, fixed_abs, tag = 'smem constant byte address 0x4 - core index']
  #allocation1 [shape = 'u32[144,128]{1,0:T(1,128)}', space=vmem, size = 0x12000, scoped, tag = 'internal scratch']
  #allocation2 [shape = 'f32[8,32]{1,0:T(8,128)}', space=vmem, size = 0x1000, scoped, tag = 'scratch operand']
  #allocation3 [shape = 'f32[1,8,32]{2,1,0:T(8,128)}', space=vmem, size = 0x1000, scoped, tag = 'scratch operand']
  %s0 = inlined_call_operand.hbm [shape: f32[2,8,32], index: 0, kind: input, shape index: {}]
  %s1 = inlined_call_operand.vmem [shape: f32[2,1,8], index: 1, kind: input, shape index: {}]
  %s2 = inlined_call_operand.vmem [shape: bf16[2,32,32], index: 2, kind: input, shape index: {}]
  %s3 = inlined_call_operand.vmem [shape: bf16[2,32,32], index: 3, kind: input, shape index: {}]
  %s4 = inlined_call_operand.vmem [shape: bf16[2,32,32], index: 4, kind: input, shape index: {}]
  %s5 = inlined_call_operand.hbm [shape: bf16[2,32,32], index: 5, kind: input, shape index: {}]
  %s6 = inlined_call_operand.vmem [shape: f32[2,1,32], index: 6, kind: input, shape index: {}]
  %s7 = inlined_call_operand.vmem [shape: f32[2,1,32], index: 7, kind: input, shape index: {}]
  %s8 = inlined_call_operand.vmem [shape: f32[2,1,32], index: 8, kind: input, shape index: {}]
  %s9 = inlined_call_operand.hbm [shape: bf16[2,32,64], index: 9, kind: input, shape index: {}]
  %s10 = inlined_call_operand.hbm [shape: f32[2,1,64], index: 10, kind: input, shape index: {}]
  %s11 = inlined_call_operand.vmem [shape: bf16[2,64,32], index: 11, kind: input, shape index: {}]
  %s12 = inlined_call_operand.vmem [shape: f32[2,1,32], index: 12, kind: input, shape index: {}]
  %s13 = inlined_call_operand.vmem [shape: f32[2,1,32], index: 13, kind: input, shape index: {}]
  %s14 = inlined_call_operand.vmem [shape: f32[2,1,32], index: 14, kind: input, shape index: {}]
  %s15 = inlined_call_operand.hbm [shape: f32[2,8,32], index: 15, kind: output, shape index: {}]
  %s16 = sld [smem:[#allocation0]]
  $region117: #{tpu_custom_call.1} parent=0
    _
  %s18 = ssub.s32 1, %s16
  %s19 = scalar_select 0, %s18, %s16
  $region1: #{tpu_custom_call.1} parent=0
    #allocation4 [shape = 'u8[8192]{0}', space=vmem, size = 0x2000, scoped, tag = 'input window, operand 0']
    #allocation5 [shape = 's32[2]{0}', space=sflag, size = 0x8, scoped, tag = 'scoped memory for tpu_custom_call.1']
    #allocation6 [shape = 's32[2]{0}', space=sflag, size = 0x8, scoped, tag = 'scoped memory for tpu_custom_call.1']
    #allocation7 [shape = 'u8[16384]{0}', space=vmem, size = 0x4000, scoped, tag = 'input window, operand 5']
    #allocation8 [shape = 's32[2]{0}', space=sflag, size = 0x8, scoped, tag = 'scoped memory for tpu_custom_call.1']
    #allocation9 [shape = 'u8[16384]{0}', space=vmem, size = 0x4000, scoped, tag = 'input window, operand 9']
    #allocation10 [shape = 'u8[1024]{0}', space=vmem, size = 0x400, scoped, tag = 'input window, operand 10']
    #allocation11 [shape = 's32[2]{0}', space=sflag, size = 0x8, scoped, tag = 'scoped memory for tpu_custom_call.1']
    #allocation12 [shape = 'u8[8192]{0}', space=vmem, size = 0x2000, scoped, tag = 'output window, operand 0']
    %20 = vsyncpa [#allocation5], 0
    %s21 = scalar_lea.sflag [#allocation5], 1
    %22 = vsyncpa %s21, 0
    %23 = vsyncpa [#allocation8], 0
    %s24 = scalar_lea.sflag [#allocation8], 1
    %25 = vsyncpa %s24, 0
    %26 = vsyncpa [#allocation11], 0
    %s27 = scalar_lea.sflag [#allocation11], 1
    %28 = vsyncpa %s27, 0
    %29 = vsyncpa [#allocation6], 0
    %s30 = scalar_lea.sflag [#allocation6], 1
    %31 = vsyncpa %s30, 0
    loop: start=0, step=1, limit=6
    $region2: #{tpu_custom_call.1} parent=1 // loop_pre_header
      _
    $region3: #{tpu_custom_call.1} parent=1 // loop_header
      %s33 = sphi 0, %s37
      %p34 = scmp.ge.s32.totalorder %s33, 6
      %s40 = sphi 0, %s52
      %s41 = sphi 0, %s48
      %s42 = sphi 0, %s40
      %s43 = sphi 0, %s41
      %s44 = sphi 0, %s42
      %s45 = sphi 0, %s43
      %s55 = sphi 0, %s57
      %s58 = sphi 0, %s55
      %s59 = sphi 0, %s58
      %s75 = sphi 0, %s59
      %s81 = sphi 0, %s83
      %s84 = sphi 0, %s81
      %s85 = sphi 0, %s84
      %s101 = sphi 0, %s85
      %s107 = sphi 0, %s109
      %s110 = sphi 0, %s107
      %s111 = sphi 0, %s110
      %s127 = sphi 0, %s111
      %s133 = sphi 0, %s135
      %s136 = sphi 0, %s133
      %s137 = sphi 0, %s136
      %s153 = sphi 0, %s137
      %s159 = sphi 0, %s161
      %s162 = sphi 0, %s159
      %s163 = sphi 0, %s162
      %s179 = sphi 0, %s163
      %s185 = sphi 0, %s187
      %s188 = sphi 0, %s185
      %s189 = sphi 0, %s188
      %s205 = sphi 0, %s189
      %s211 = sphi 0, %s213
      %s214 = sphi 0, %s211
      %s215 = sphi 0, %s214
      %s231 = sphi 0, %s215
      %s237 = sphi 0, %s239
      %s240 = sphi 0, %s237
      %s241 = sphi 0, %s240
      %s257 = sphi 0, %s241
      %s263 = sphi 0, %s265
      %s266 = sphi 0, %s263
      %s267 = sphi 0, %s266
      %s283 = sphi 0, %s267
      %s289 = sphi 0, %s291
      %s292 = sphi 0, %s289
      %s293 = sphi 0, %s292
      %s309 = sphi 0, %s293
      %s315 = sphi 0, %s317
      %s318 = sphi 0, %s315
      %s319 = sphi 0, %s318
      %s335 = sphi 0, %s319
      %s341 = sphi 0, %s343
      %s344 = sphi 0, %s341
      %s345 = sphi 0, %s344
      %s361 = sphi 0, %s345
      %s367 = sphi 0, %s369
      %s370 = sphi 0, %s367
      %s371 = sphi 0, %s370
      %s387 = sphi 0, %s371
      %s393 = sphi 0, %s395
      %s396 = sphi 0, %s393
      %s397 = sphi 0, %s396
      %s413 = sphi 0, %s397
      %s419 = sphi 0, %s421
      %s422 = sphi 0, %s419
      %s423 = sphi 0, %s422
      %s439 = sphi 0, %s423
      %s445 = sphi 0, %s447
      %s448 = sphi 0, %s445
      %s449 = sphi 0, %s448
      %s465 = sphi 0, %s449
    $region4: #{tpu_custom_call.1} parent=1 // loop_header_branch
      %36 = sbr.rel (%p34) target = $region8
    $region5: #{tpu_custom_call.1} parent=1 // loop_body
      %s38 = ssub.s32 %s33, 1
      %s39 = ssub.s32 %s33, 2
      %s46 = sadd.s32 1, %s41
      %p47 = scmp.ge.s32.totalorder %s46, 2
      %s48 = scalar_select %p47, 0, %s46
      %s49 = sadd.s32 1, %s40
      %s50 = scalar_select %p47, %s49, %s40
      %p51 = scmp.ge.s32.totalorder %s50, 2
      %s52 = scalar_select %p51, 0, %s50
      %s53 = ssub.s32 %s40, %s52
      %p54 = scmp.eq.s32.totalorder %s53, 0
      %s56 = sadd.s32 %s55, 1
      %s57 = scalar_select %p54, %s55, %s56
      %p60 = pneg %p54
      %p61 = scmp.eq.s32.totalorder %s33, 3
      %p62 = por %p60, %p61
      %p63 = scmp.ne.s32.totalorder %s55, %s58
      %p64 = scmp.eq.s32.totalorder %s33, 0
      %p65 = por %p63, %p64
      %p66 = scmp.ne.s32.totalorder %s55, %s58
      %p67 = scmp.eq.s32.totalorder %s38, 3
      %p68 = por %p66, %p67
      %p69 = scmp.ne.s32.totalorder %s58, %s59
      %p70 = scmp.eq.s32.totalorder %s38, 0
      %p71 = por %p69, %p70
      %p72 = scmp.ne.s32.totalorder %s58, %s59
      %p73 = scmp.eq.s32.totalorder %s39, 3
      %p74 = por %p72, %p73
      %p76 = scmp.ne.s32.totalorder %s59, %s75
      %p77 = scmp.eq.s32.totalorder %s39, 0
      %p78 = por %p76, %p77
      %s79 = ssub.s32 %s40, %s52
      %p80 = scmp.eq.s32.totalorder %s79, 0
      %s82 = sadd.s32 %s81, 1
      %s83 = scalar_select %p80, %s81, %s82
      %p86 = pneg %p80
      %p87 = scmp.eq.s32.totalorder %s33, 3
      %p88 = por %p86, %p87
      %p89 = scmp.ne.s32.totalorder %s81, %s84
      %p90 = scmp.eq.s32.totalorder %s33, 0
      %p91 = por %p89, %p90
      %p92 = scmp.ne.s32.totalorder %s81, %s84
      %p93 = scmp.eq.s32.totalorder %s38, 3
      %p94 = por %p92, %p93
      %p95 = scmp.ne.s32.totalorder %s84, %s85
      %p96 = scmp.eq.s32.totalorder %s38, 0
      %p97 = por %p95, %p96
      %p98 = scmp.ne.s32.totalorder %s84, %s85
      %p99 = scmp.eq.s32.totalorder %s39, 3
      %p100 = por %p98, %p99
      %p102 = scmp.ne.s32.totalorder %s85, %s101
      %p103 = scmp.eq.s32.totalorder %s39, 0
      %p104 = por %p102, %p103
      %s105 = ssub.s32 %s41, %s48
      %p106 = scmp.eq.s32.totalorder %s105, 0
      %s108 = sadd.s32 %s107, 1
      %s109 = scalar_select %p106, %s107, %s108
      %p112 = pneg %p106
      %p113 = scmp.eq.s32.totalorder %s33, 3
      %p114 = por %p112, %p113
      %p115 = scmp.ne.s32.totalorder %s107, %s110
      %p116 = scmp.eq.s32.totalorder %s33, 0
      %p117 = por %p115, %p116
      %p118 = scmp.ne.s32.totalorder %s107, %s110
      %p119 = scmp.eq.s32.totalorder %s38, 3
      %p120 = por %p118, %p119
      %p121 = scmp.ne.s32.totalorder %s110, %s111
      %p122 = scmp.eq.s32.totalorder %s38, 0
      %p123 = por %p121, %p122
      %p124 = scmp.ne.s32.totalorder %s110, %s111
      %p125 = scmp.eq.s32.totalorder %s39, 3
      %p126 = por %p124, %p125
      %p128 = scmp.ne.s32.totalorder %s111, %s127
      %p129 = scmp.eq.s32.totalorder %s39, 0
      %p130 = por %p128, %p129
      %s131 = ssub.s32 %s41, %s48
      %p132 = scmp.eq.s32.totalorder %s131, 0
      %s134 = sadd.s32 %s133, 1
      %s135 = scalar_select %p132, %s133, %s134
      %p138 = pneg %p132
      %p139 = scmp.eq.s32.totalorder %s33, 3
      %p140 = por %p138, %p139
      %p141 = scmp.ne.s32.totalorder %s133, %s136
      %p142 = scmp.eq.s32.totalorder %s33, 0
      %p143 = por %p141, %p142
      %p144 = scmp.ne.s32.totalorder %s133, %s136
      %p145 = scmp.eq.s32.totalorder %s38, 3
      %p146 = por %p144, %p145
      %p147 = scmp.ne.s32.totalorder %s136, %s137
      %p148 = scmp.eq.s32.totalorder %s38, 0
      %p149 = por %p147, %p148
      %p150 = scmp.ne.s32.totalorder %s136, %s137
      %p151 = scmp.eq.s32.totalorder %s39, 3
      %p152 = por %p150, %p151
      %p154 = scmp.ne.s32.totalorder %s137, %s153
      %p155 = scmp.eq.s32.totalorder %s39, 0
      %p156 = por %p154, %p155
      %s157 = ssub.s32 %s41, %s48
      %p158 = scmp.eq.s32.totalorder %s157, 0
      %s160 = sadd.s32 %s159, 1
      %s161 = scalar_select %p158, %s159, %s160
      %p164 = pneg %p158
      %p165 = scmp.eq.s32.totalorder %s33, 3
      %p166 = por %p164, %p165
      %p167 = scmp.ne.s32.totalorder %s159, %s162
      %p168 = scmp.eq.s32.totalorder %s33, 0
      %p169 = por %p167, %p168
      %p170 = scmp.ne.s32.totalorder %s159, %s162
      %p171 = scmp.eq.s32.totalorder %s38, 3
      %p172 = por %p170, %p171
      %p173 = scmp.ne.s32.totalorder %s162, %s163
      %p174 = scmp.eq.s32.totalorder %s38, 0
      %p175 = por %p173, %p174
      %p176 = scmp.ne.s32.totalorder %s162, %s163
      %p177 = scmp.eq.s32.totalorder %s39, 3
      %p178 = por %p176, %p177
      %p180 = scmp.ne.s32.totalorder %s163, %s179
      %p181 = scmp.eq.s32.totalorder %s39, 0
      %p182 = por %p180, %p181
      %s183 = ssub.s32 %s41, %s48
      %p184 = scmp.eq.s32.totalorder %s183, 0
      %s186 = sadd.s32 %s185, 1
      %s187 = scalar_select %p184, %s185, %s186
      %p190 = pneg %p184
      %p191 = scmp.eq.s32.totalorder %s33, 3
      %p192 = por %p190, %p191
      %p193 = scmp.ne.s32.totalorder %s185, %s188
      %p194 = scmp.eq.s32.totalorder %s33, 0
      %p195 = por %p193, %p194
      %p196 = scmp.ne.s32.totalorder %s185, %s188
      %p197 = scmp.eq.s32.totalorder %s38, 3
      %p198 = por %p196, %p197
      %p199 = scmp.ne.s32.totalorder %s188, %s189
      %p200 = scmp.eq.s32.totalorder %s38, 0
      %p201 = por %p199, %p200
      %p202 = scmp.ne.s32.totalorder %s188, %s189
      %p203 = scmp.eq.s32.totalorder %s39, 3
      %p204 = por %p202, %p203
      %p206 = scmp.ne.s32.totalorder %s189, %s205
      %p207 = scmp.eq.s32.totalorder %s39, 0
      %p208 = por %p206, %p207
      %s209 = ssub.s32 %s41, %s48
      %p210 = scmp.eq.s32.totalorder %s209, 0
      %s212 = sadd.s32 %s211, 1
      %s213 = scalar_select %p210, %s211, %s212
      %p216 = pneg %p210
      %p217 = scmp.eq.s32.totalorder %s33, 3
      %p218 = por %p216, %p217
      %p219 = scmp.ne.s32.totalorder %s211, %s214
      %p220 = scmp.eq.s32.totalorder %s33, 0
      %p221 = por %p219, %p220
      %p222 = scmp.ne.s32.totalorder %s211, %s214
      %p223 = scmp.eq.s32.totalorder %s38, 3
      %p224 = por %p222, %p223
      %p225 = scmp.ne.s32.totalorder %s214, %s215
      %p226 = scmp.eq.s32.totalorder %s38, 0
      %p227 = por %p225, %p226
      %p228 = scmp.ne.s32.totalorder %s214, %s215
      %p229 = scmp.eq.s32.totalorder %s39, 3
      %p230 = por %p228, %p229
      %p232 = scmp.ne.s32.totalorder %s215, %s231
      %p233 = scmp.eq.s32.totalorder %s39, 0
      %p234 = por %p232, %p233
      %s235 = ssub.s32 %s41, %s48
      %p236 = scmp.eq.s32.totalorder %s235, 0
      %s238 = sadd.s32 %s237, 1
      %s239 = scalar_select %p236, %s237, %s238
      %p242 = pneg %p236
      %p243 = scmp.eq.s32.totalorder %s33, 3
      %p244 = por %p242, %p243
      %p245 = scmp.ne.s32.totalorder %s237, %s240
      %p246 = scmp.eq.s32.totalorder %s33, 0
      %p247 = por %p245, %p246
      %p248 = scmp.ne.s32.totalorder %s237, %s240
      %p249 = scmp.eq.s32.totalorder %s38, 3
      %p250 = por %p248, %p249
      %p251 = scmp.ne.s32.totalorder %s240, %s241
      %p252 = scmp.eq.s32.totalorder %s38, 0
      %p253 = por %p251, %p252
      %p254 = scmp.ne.s32.totalorder %s240, %s241
      %p255 = scmp.eq.s32.totalorder %s39, 3
      %p256 = por %p254, %p255
      %p258 = scmp.ne.s32.totalorder %s241, %s257
      %p259 = scmp.eq.s32.totalorder %s39, 0
      %p260 = por %p258, %p259
      %s261 = ssub.s32 %s41, %s48
      %p262 = scmp.eq.s32.totalorder %s261, 0
      %s264 = sadd.s32 %s263, 1
      %s265 = scalar_select %p262, %s263, %s264
      %p268 = pneg %p262
      %p269 = scmp.eq.s32.totalorder %s33, 3
      %p270 = por %p268, %p269
      %p271 = scmp.ne.s32.totalorder %s263, %s266
      %p272 = scmp.eq.s32.totalorder %s33, 0
      %p273 = por %p271, %p272
      %p274 = scmp.ne.s32.totalorder %s263, %s266
      %p275 = scmp.eq.s32.totalorder %s38, 3
      %p276 = por %p274, %p275
      %p277 = scmp.ne.s32.totalorder %s266, %s267
      %p278 = scmp.eq.s32.totalorder %s38, 0
      %p279 = por %p277, %p278
      %p280 = scmp.ne.s32.totalorder %s266, %s267
      %p281 = scmp.eq.s32.totalorder %s39, 3
      %p282 = por %p280, %p281
      %p284 = scmp.ne.s32.totalorder %s267, %s283
      %p285 = scmp.eq.s32.totalorder %s39, 0
      %p286 = por %p284, %p285
      %s287 = ssub.s32 %s41, %s48
      %p288 = scmp.eq.s32.totalorder %s287, 0
      %s290 = sadd.s32 %s289, 1
      %s291 = scalar_select %p288, %s289, %s290
      %p294 = pneg %p288
      %p295 = scmp.eq.s32.totalorder %s33, 3
      %p296 = por %p294, %p295
      %p297 = scmp.ne.s32.totalorder %s289, %s292
      %p298 = scmp.eq.s32.totalorder %s33, 0
      %p299 = por %p297, %p298
      %p300 = scmp.ne.s32.totalorder %s289, %s292
      %p301 = scmp.eq.s32.totalorder %s38, 3
      %p302 = por %p300, %p301
      %p303 = scmp.ne.s32.totalorder %s292, %s293
      %p304 = scmp.eq.s32.totalorder %s38, 0
      %p305 = por %p303, %p304
      %p306 = scmp.ne.s32.totalorder %s292, %s293
      %p307 = scmp.eq.s32.totalorder %s39, 3
      %p308 = por %p306, %p307
      %p310 = scmp.ne.s32.totalorder %s293, %s309
      %p311 = scmp.eq.s32.totalorder %s39, 0
      %p312 = por %p310, %p311
      %s313 = ssub.s32 %s41, %s48
      %p314 = scmp.eq.s32.totalorder %s313, 0
      %s316 = sadd.s32 %s315, 1
      %s317 = scalar_select %p314, %s315, %s316
      %p320 = pneg %p314
      %p321 = scmp.eq.s32.totalorder %s33, 3
      %p322 = por %p320, %p321
      %p323 = scmp.ne.s32.totalorder %s315, %s318
      %p324 = scmp.eq.s32.totalorder %s33, 0
      %p325 = por %p323, %p324
      %p326 = scmp.ne.s32.totalorder %s315, %s318
      %p327 = scmp.eq.s32.totalorder %s38, 3
      %p328 = por %p326, %p327
      %p329 = scmp.ne.s32.totalorder %s318, %s319
      %p330 = scmp.eq.s32.totalorder %s38, 0
      %p331 = por %p329, %p330
      %p332 = scmp.ne.s32.totalorder %s318, %s319
      %p333 = scmp.eq.s32.totalorder %s39, 3
      %p334 = por %p332, %p333
      %p336 = scmp.ne.s32.totalorder %s319, %s335
      %p337 = scmp.eq.s32.totalorder %s39, 0
      %p338 = por %p336, %p337
      %s339 = ssub.s32 %s41, %s48
      %p340 = scmp.eq.s32.totalorder %s339, 0
      %s342 = sadd.s32 %s341, 1
      %s343 = scalar_select %p340, %s341, %s342
      %p346 = pneg %p340
      %p347 = scmp.eq.s32.totalorder %s33, 3
      %p348 = por %p346, %p347
      %p349 = scmp.ne.s32.totalorder %s341, %s344
      %p350 = scmp.eq.s32.totalorder %s33, 0
      %p351 = por %p349, %p350
      %p352 = scmp.ne.s32.totalorder %s341, %s344
      %p353 = scmp.eq.s32.totalorder %s38, 3
      %p354 = por %p352, %p353
      %p355 = scmp.ne.s32.totalorder %s344, %s345
      %p356 = scmp.eq.s32.totalorder %s38, 0
      %p357 = por %p355, %p356
      %p358 = scmp.ne.s32.totalorder %s344, %s345
      %p359 = scmp.eq.s32.totalorder %s39, 3
      %p360 = por %p358, %p359
      %p362 = scmp.ne.s32.totalorder %s345, %s361
      %p363 = scmp.eq.s32.totalorder %s39, 0
      %p364 = por %p362, %p363
      %s365 = ssub.s32 %s41, %s48
      %p366 = scmp.eq.s32.totalorder %s365, 0
      %s368 = sadd.s32 %s367, 1
      %s369 = scalar_select %p366, %s367, %s368
      %p372 = pneg %p366
      %p373 = scmp.eq.s32.totalorder %s33, 3
      %p374 = por %p372, %p373
      %p375 = scmp.ne.s32.totalorder %s367, %s370
      %p376 = scmp.eq.s32.totalorder %s33, 0
      %p377 = por %p375, %p376
      %p378 = scmp.ne.s32.totalorder %s367, %s370
      %p379 = scmp.eq.s32.totalorder %s38, 3
      %p380 = por %p378, %p379
      %p381 = scmp.ne.s32.totalorder %s370, %s371
      %p382 = scmp.eq.s32.totalorder %s38, 0
      %p383 = por %p381, %p382
      %p384 = scmp.ne.s32.totalorder %s370, %s371
      %p385 = scmp.eq.s32.totalorder %s39, 3
      %p386 = por %p384, %p385
      %p388 = scmp.ne.s32.totalorder %s371, %s387
      %p389 = scmp.eq.s32.totalorder %s39, 0
      %p390 = por %p388, %p389
      %s391 = ssub.s32 %s41, %s48
      %p392 = scmp.eq.s32.totalorder %s391, 0
      %s394 = sadd.s32 %s393, 1
      %s395 = scalar_select %p392, %s393, %s394
      %p398 = pneg %p392
      %p399 = scmp.eq.s32.totalorder %s33, 3
      %p400 = por %p398, %p399
      %p401 = scmp.ne.s32.totalorder %s393, %s396
      %p402 = scmp.eq.s32.totalorder %s33, 0
      %p403 = por %p401, %p402
      %p404 = scmp.ne.s32.totalorder %s393, %s396
      %p405 = scmp.eq.s32.totalorder %s38, 3
      %p406 = por %p404, %p405
      %p407 = scmp.ne.s32.totalorder %s396, %s397
      %p408 = scmp.eq.s32.totalorder %s38, 0
      %p409 = por %p407, %p408
      %p410 = scmp.ne.s32.totalorder %s396, %s397
      %p411 = scmp.eq.s32.totalorder %s39, 3
      %p412 = por %p410, %p411
      %p414 = scmp.ne.s32.totalorder %s397, %s413
      %p415 = scmp.eq.s32.totalorder %s39, 0
      %p416 = por %p414, %p415
      %s417 = ssub.s32 %s41, %s48
      %p418 = scmp.eq.s32.totalorder %s417, 0
      %s420 = sadd.s32 %s419, 1
      %s421 = scalar_select %p418, %s419, %s420
      %p424 = pneg %p418
      %p425 = scmp.eq.s32.totalorder %s33, 3
      %p426 = por %p424, %p425
      %p427 = scmp.ne.s32.totalorder %s419, %s422
      %p428 = scmp.eq.s32.totalorder %s33, 0
      %p429 = por %p427, %p428
      %p430 = scmp.ne.s32.totalorder %s419, %s422
      %p431 = scmp.eq.s32.totalorder %s38, 3
      %p432 = por %p430, %p431
      %p433 = scmp.ne.s32.totalorder %s422, %s423
      %p434 = scmp.eq.s32.totalorder %s38, 0
      %p435 = por %p433, %p434
      %p436 = scmp.ne.s32.totalorder %s422, %s423
      %p437 = scmp.eq.s32.totalorder %s39, 3
      %p438 = por %p436, %p437
      %p440 = scmp.ne.s32.totalorder %s423, %s439
      %p441 = scmp.eq.s32.totalorder %s39, 0
      %p442 = por %p440, %p441
      %s443 = ssub.s32 %s40, %s52
      %p444 = scmp.eq.s32.totalorder %s443, 0
      %s446 = sadd.s32 %s445, 1
      %s447 = scalar_select %p444, %s445, %s446
      %p450 = pneg %p444
      %p451 = scmp.eq.s32.totalorder %s33, 3
      %p452 = por %p450, %p451
      %p453 = scmp.ne.s32.totalorder %s445, %s448
      %p454 = scmp.eq.s32.totalorder %s33, 0
      %p455 = por %p453, %p454
      %p456 = scmp.ne.s32.totalorder %s445, %s448
      %p457 = scmp.eq.s32.totalorder %s38, 3
      %p458 = por %p456, %p457
      %p459 = scmp.ne.s32.totalorder %s448, %s449
      %p460 = scmp.eq.s32.totalorder %s38, 0
      %p461 = por %p459, %p460
      %p462 = scmp.ne.s32.totalorder %s448, %s449
      %p463 = scmp.eq.s32.totalorder %s39, 3
      %p464 = por %p462, %p463
      %p466 = scmp.ne.s32.totalorder %s449, %s465
      %p467 = scmp.eq.s32.totalorder %s39, 0
      %p468 = por %p466, %p467
      %p469 = scmp.le.s32.totalorder 1, %s33
      %p470 = scmp.lt.s32.totalorder %s33, 5
      %p471 = pnand %p469, %p470
      %p472 = pneg %p471
      // Predicated region
      $region9: #{tpu_custom_call.1} parent=5 // pred_check
        _
      $region10: #{tpu_custom_call.1} parent=5 // pred_check_branch
        %474 = sbr.rel (%p471) target = $region12
      $region11: #{tpu_custom_call.1} parent=5 // pred_region
        %s475 = ssub.s32 %s33, 1
      $region12: #{tpu_custom_call.1} parent=5 // pred_fallthru
        _
      %p476 = scmp.lt.s32.totalorder %s33, 4
      // Predicated region
      $region13: #{tpu_custom_call.1} parent=5 // pred_check
        %p477 = pneg %p476
      $region14: #{tpu_custom_call.1} parent=5 // pred_check_branch
        %479 = sbr.rel (%p477) target = $region16
      $region15: #{tpu_custom_call.1} parent=5 // pred_region
        // Predicated region
        $region17: #{tpu_custom_call.1} parent=15 // pred_check
          %p480 = pneg %p65
        $region18: #{tpu_custom_call.1} parent=15 // pred_check_branch
          %482 = sbr.rel (%p480) target = $region20
        $region19: #{tpu_custom_call.1} parent=15 // pred_region
          %s483 = sand.u32 %s55, 1
          %s484 = scalar_lea.sflag [#allocation5], %s483
          %s485 = sand.u32 %s55, 1
          %s486 = smul.addr %s485, 8
          %s487 = scalar_lea.vmem [#allocation4], %s486
          %s489 = ssub.s32 128, 128
          %490 = vsyncadd %s484, %s489
          %s491 = smul.addr %s40, 128
          %s492 = scalar_lea.hbm %s0, %s491
          %s494 = sshll.u32 %s487, 4
          %s495 = int_to_ptr.vmem [resolvable:$true] %s494
          %497 = dma.hbm_to_vmem [thread:$0]  %s492, 128, %s495, %s484
        $region20: #{tpu_custom_call.1} parent=15 // pred_fallthru
          _
        // Predicated region
        $region21: #{tpu_custom_call.1} parent=15 // pred_check
          %p498 = pneg %p91
        $region22: #{tpu_custom_call.1} parent=15 // pred_check_branch
          %500 = sbr.rel (%p498) target = $region24
        $region23: #{tpu_custom_call.1} parent=15 // pred_region
          %p501 = scmp.lt.s32.totalorder %s40, 1
          %s502 = scalar_select %p501, %s40, 1
          %s503 = scalar_lea.vmem %s1, %s502
        $region24: #{tpu_custom_call.1} parent=15 // pred_fallthru
          _
        // Predicated region
        $region25: #{tpu_custom_call.1} parent=15 // pred_check
          %p504 = pneg %p117
        $region26: #{tpu_custom_call.1} parent=15 // pred_check_branch
          %506 = sbr.rel (%p504) target = $region28
        $region27: #{tpu_custom_call.1} parent=15 // pred_region
          %p507 = scmp.lt.s32.totalorder %s41, 1
          %s508 = scalar_select %p507, %s41, 1
          %s509 = smul.addr %s508, 4
          %s510 = smul.addr %s509, 4
          %s511 = scalar_lea.vmem %s2, %s510
        $region28: #{tpu_custom_call.1} parent=15 // pred_fallthru
          _
        // Predicated region
        $region29: #{tpu_custom_call.1} parent=15 // pred_check
          %p512 = pneg %p143
        $region30: #{tpu_custom_call.1} parent=15 // pred_check_branch
          %514 = sbr.rel (%p512) target = $region32
        $region31: #{tpu_custom_call.1} parent=15 // pred_region
          %p515 = scmp.lt.s32.totalorder %s41, 1
          %s516 = scalar_select %p515, %s41, 1
          %s517 = smul.addr %s516, 4
          %s518 = smul.addr %s517, 4
          %s519 = scalar_lea.vmem %s3, %s518
        $region32: #{tpu_custom_call.1} parent=15 // pred_fallthru
          _
        // Predicated region
        $region33: #{tpu_custom_call.1} parent=15 // pred_check
          %p520 = pneg %p169
        $region34: #{tpu_custom_call.1} parent=15 // pred_check_branch
          %522 = sbr.rel (%p520) target = $region36
        $region35: #{tpu_custom_call.1} parent=15 // pred_region
          %p523 = scmp.lt.s32.totalorder %s41, 1
          %s524 = scalar_select %p523, %s41, 1
          %s525 = smul.addr %s524, 4
          %s526 = smul.addr %s525, 4
          %s527 = scalar_lea.vmem %s4, %s526
        $region36: #{tpu_custom_call.1} parent=15 // pred_fallthru
          _
        // Predicated region
        $region37: #{tpu_custom_call.1} parent=15 // pred_check
          %p528 = pneg %p195
        $region38: #{tpu_custom_call.1} parent=15 // pred_check_branch
          %530 = sbr.rel (%p528) target = $region40
        $region39: #{tpu_custom_call.1} parent=15 // pred_region
          %s531 = sand.u32 %s33, 1
          %s532 = scalar_lea.sflag [#allocation8], %s531
          %s533 = sand.u32 %s185, 1
          %s534 = smul.addr %s533, 16
          %s535 = scalar_lea.vmem [#allocation7], %s534
          %s537 = ssub.s32 256, 256
          %538 = vsyncadd %s532, %s537
          %s539 = smul.addr %s41, 4
          %s540 = smul.addr %s539, 64
          %s541 = scalar_lea.hbm %s5, %s540
          %s542 = sshll.u32 %s535, 4
          %s543 = int_to_ptr.vmem [resolvable:$true] %s542
          %548 = dma.hbm_to_vmem [thread:$0]  %s541, 256, %s543, %s532, 64, 64, 4
        $region40: #{tpu_custom_call.1} parent=15 // pred_fallthru
          _
        // Predicated region
        $region41: #{tpu_custom_call.1} parent=15 // pred_check
          %p549 = pneg %p221
        $region42: #{tpu_custom_call.1} parent=15 // pred_check_branch
          %551 = sbr.rel (%p549) target = $region44
        $region43: #{tpu_custom_call.1} parent=15 // pred_region
          %p552 = scmp.lt.s32.totalorder %s41, 1
          %s553 = scalar_select %p552, %s41, 1
          %s554 = scalar_lea.vmem %s6, %s553
        $region44: #{tpu_custom_call.1} parent=15 // pred_fallthru
          _
        // Predicated region
        $region45: #{tpu_custom_call.1} parent=15 // pred_check
          %p555 = pneg %p247
        $region46: #{tpu_custom_call.1} parent=15 // pred_check_branch
          %557 = sbr.rel (%p555) target = $region48
        $region47: #{tpu_custom_call.1} parent=15 // pred_region
          %p558 = scmp.lt.s32.totalorder %s41, 1
          %s559 = scalar_select %p558, %s41, 1
          %s560 = scalar_lea.vmem %s7, %s559
        $region48: #{tpu_custom_call.1} parent=15 // pred_fallthru
          _
        // Predicated region
        $region49: #{tpu_custom_call.1} parent=15 // pred_check
          %p561 = pneg %p273
        $region50: #{tpu_custom_call.1} parent=15 // pred_check_branch
          %563 = sbr.rel (%p561) target = $region52
        $region51: #{tpu_custom_call.1} parent=15 // pred_region
          %p564 = scmp.lt.s32.totalorder %s41, 1
          %s565 = scalar_select %p564, %s41, 1
          %s566 = scalar_lea.vmem %s8, %s565
        $region52: #{tpu_custom_call.1} parent=15 // pred_fallthru
          _
        // Predicated region
        $region53: #{tpu_custom_call.1} parent=15 // pred_check
          %p567 = pneg %p299
        $region54: #{tpu_custom_call.1} parent=15 // pred_check_branch
          %569 = sbr.rel (%p567) target = $region56
        $region55: #{tpu_custom_call.1} parent=15 // pred_region
          %s570 = sand.u32 %s33, 1
          %s571 = scalar_lea.sflag [#allocation8], %s570
          %s572 = sand.u32 %s289, 1
          %s573 = smul.addr %s572, 16
          %s574 = scalar_lea.vmem [#allocation9], %s573
          %s576 = ssub.s32 256, 256
          %577 = vsyncadd %s571, %s576
          %s578 = smul.addr %s41, 4
          %s579 = smul.addr %s578, 64
          %s580 = scalar_lea.hbm %s9, %s579
          %s581 = sshll.u32 %s574, 4
          %s582 = int_to_ptr.vmem [resolvable:$true] %s581
          %587 = dma.hbm_to_vmem [thread:$0]  %s580, 256, %s582, %s571, 64, 64, 4
        $region56: #{tpu_custom_call.1} parent=15 // pred_fallthru
          _
        // Predicated region
        $region57: #{tpu_custom_call.1} parent=15 // pred_check
          %p588 = pneg %p325
        $region58: #{tpu_custom_call.1} parent=15 // pred_check_branch
          %590 = sbr.rel (%p588) target = $region60
        $region59: #{tpu_custom_call.1} parent=15 // pred_region
          %s591 = sand.u32 %s315, 1
          %s592 = scalar_lea.sflag [#allocation11], %s591
          %s593 = sand.u32 %s315, 1
          %s594 = scalar_lea.vmem [#allocation10], %s593
          %s596 = ssub.s32 16, 16
          %597 = vsyncadd %s592, %s596
          %s598 = smul.addr %s41, 16
          %s599 = scalar_lea.hbm %s10, %s598
          %s601 = sshll.u32 %s594, 4
          %s602 = int_to_ptr.vmem [resolvable:$true] %s601
          %604 = dma.hbm_to_vmem [thread:$0]  %s599, 16, %s602, %s592
        $region60: #{tpu_custom_call.1} parent=15 // pred_fallthru
          _
        // Predicated region
        $region61: #{tpu_custom_call.1} parent=15 // pred_check
          %p605 = pneg %p351
        $region62: #{tpu_custom_call.1} parent=15 // pred_check_branch
          %607 = sbr.rel (%p605) target = $region64
        $region63: #{tpu_custom_call.1} parent=15 // pred_region
          %p608 = scmp.lt.s32.totalorder %s41, 1
          %s609 = scalar_select %p608, %s41, 1
          %s610 = smul.addr %s609, 8
          %s611 = smul.addr %s610, 4
          %s612 = scalar_lea.vmem %s11, %s611
        $region64: #{tpu_custom_call.1} parent=15 // pred_fallthru
          _
        // Predicated region
        $region65: #{tpu_custom_call.1} parent=15 // pred_check
          %p613 = pneg %p377
        $region66: #{tpu_custom_call.1} parent=15 // pred_check_branch
          %615 = sbr.rel (%p613) target = $region68
        $region67: #{tpu_custom_call.1} parent=15 // pred_region
          %p616 = scmp.lt.s32.totalorder %s41, 1
          %s617 = scalar_select %p616, %s41, 1
          %s618 = scalar_lea.vmem %s12, %s617
        $region68: #{tpu_custom_call.1} parent=15 // pred_fallthru
          _
        // Predicated region
        $region69: #{tpu_custom_call.1} parent=15 // pred_check
          %p619 = pneg %p403
        $region70: #{tpu_custom_call.1} parent=15 // pred_check_branch
          %621 = sbr.rel (%p619) target = $region72
        $region71: #{tpu_custom_call.1} parent=15 // pred_region
          %p622 = scmp.lt.s32.totalorder %s41, 1
          %s623 = scalar_select %p622, %s41, 1
          %s624 = scalar_lea.vmem %s13, %s623
        $region72: #{tpu_custom_call.1} parent=15 // pred_fallthru
          _
        // Predicated region
        $region73: #{tpu_custom_call.1} parent=15 // pred_check
          %p625 = pneg %p429
        $region74: #{tpu_custom_call.1} parent=15 // pred_check_branch
          %627 = sbr.rel (%p625) target = $region76
        $region75: #{tpu_custom_call.1} parent=15 // pred_region
          %p628 = scmp.lt.s32.totalorder %s41, 1
          %s629 = scalar_select %p628, %s41, 1
          %s630 = scalar_lea.vmem %s14, %s629
        $region76: #{tpu_custom_call.1} parent=15 // pred_fallthru
          _
      $region16: #{tpu_custom_call.1} parent=5 // pred_fallthru
        _
      %p631 = scmp.le.s32.totalorder 1, %s33
      %p632 = scmp.lt.s32.totalorder %s33, 5
      %p633 = pnand %p631, %p632
      %p634 = pneg %p633
      // Predicated region
      $region77: #{tpu_custom_call.1} parent=5 // pred_check
        _
      $region78: #{tpu_custom_call.1} parent=5 // pred_check_branch
        %636 = sbr.rel (%p633) target = $region80
      $region79: #{tpu_custom_call.1} parent=5 // pred_region
        %s637 = ssub.s32 %s33, 1
        %s638 = sand.u32 %s58, 1
        %s639 = scalar_lea.sflag [#allocation5], %s638
        %s640 = sand.u32 %s58, 1
        %s641 = smul.addr %s640, 8
        %s642 = scalar_lea.vmem [#allocation4], %s641
        // Predicated region
        $region81: #{tpu_custom_call.1} parent=79 // pred_check
          %p643 = pneg %p71
        $region82: #{tpu_custom_call.1} parent=79 // pred_check_branch
          %645 = sbr.rel (%p643) target = $region84
        $region83: #{tpu_custom_call.1} parent=79 // pred_region
          %646 = dma.done %s639, 128
        $region84: #{tpu_custom_call.1} parent=79 // pred_fallthru
          _
        %s647 = sand.u32 %s38, 1
        %s648 = scalar_lea.sflag [#allocation8], %s647
        %s649 = sand.u32 %s188, 1
        %s650 = smul.addr %s649, 16
        %s651 = scalar_lea.vmem [#allocation7], %s650
        // Predicated region
        $region85: #{tpu_custom_call.1} parent=79 // pred_check
          %p652 = pneg %p201
        $region86: #{tpu_custom_call.1} parent=79 // pred_check_branch
          %654 = sbr.rel (%p652) target = $region88
        $region87: #{tpu_custom_call.1} parent=79 // pred_region
          %655 = dma.done %s648, 256
        $region88: #{tpu_custom_call.1} parent=79 // pred_fallthru
          _
        %s656 = sand.u32 %s38, 1
        %s657 = scalar_lea.sflag [#allocation8], %s656
        %s658 = sand.u32 %s292, 1
        %s659 = smul.addr %s658, 16
        %s660 = scalar_lea.vmem [#allocation9], %s659
        // Predicated region
        $region89: #{tpu_custom_call.1} parent=79 // pred_check
          %p661 = pneg %p305
        $region90: #{tpu_custom_call.1} parent=79 // pred_check_branch
          %663 = sbr.rel (%p661) target = $region92
        $region91: #{tpu_custom_call.1} parent=79 // pred_region
          %664 = dma.done %s657, 256
        $region92: #{tpu_custom_call.1} parent=79 // pred_fallthru
          _
        %s665 = sand.u32 %s318, 1
        %s666 = scalar_lea.sflag [#allocation11], %s665
        %s667 = sand.u32 %s318, 1
        %s668 = scalar_lea.vmem [#allocation10], %s667
        // Predicated region
        $region93: #{tpu_custom_call.1} parent=79 // pred_check
          %p669 = pneg %p331
        $region94: #{tpu_custom_call.1} parent=79 // pred_check_branch
          %671 = sbr.rel (%p669) target = $region96
        $region95: #{tpu_custom_call.1} parent=79 // pred_region
          %672 = dma.done %s666, 16
        $region96: #{tpu_custom_call.1} parent=79 // pred_fallthru
          _
        %s673 = sand.u32 %s58, 1
        %s674 = scalar_lea.sflag [#allocation5], %s673
        %s675 = sand.u32 %s58, 1
        %s676 = smul.addr %s675, 8
        %s677 = scalar_lea.vmem [#allocation4], %s676
        %p678 = pneg %p71
        %p679 = pneg %p68
        %p680 = scmp.lt.s32.totalorder %s42, 1
        %s681 = scalar_select %p680, %s42, 1
        %s682 = scalar_lea.vmem %s1, %s681
        %p683 = pneg %p97
        %p684 = pneg %p94
        %p685 = scmp.lt.s32.totalorder %s43, 1
        %s686 = scalar_select %p685, %s43, 1
        %s687 = smul.addr %s686, 4
        %s688 = smul.addr %s687, 4
        %s689 = scalar_lea.vmem %s2, %s688
        %p690 = pneg %p123
        %p691 = pneg %p120
        %p692 = scmp.lt.s32.totalorder %s43, 1
        %s693 = scalar_select %p692, %s43, 1
        %s694 = smul.addr %s693, 4
        %s695 = smul.addr %s694, 4
        %s696 = scalar_lea.vmem %s3, %s695
        %p697 = pneg %p149
        %p698 = pneg %p146
        %p699 = scmp.lt.s32.totalorder %s43, 1
        %s700 = scalar_select %p699, %s43, 1
        %s701 = smul.addr %s700, 4
        %s702 = smul.addr %s701, 4
        %s703 = scalar_lea.vmem %s4, %s702
        %p704 = pneg %p175
        %p705 = pneg %p172
        %s706 = sand.u32 %s38, 1
        %s707 = scalar_lea.sflag [#allocation8], %s706
        %s708 = sand.u32 %s188, 1
        %s709 = smul.addr %s708, 16
        %s710 = scalar_lea.vmem [#allocation7], %s709
        %p711 = pneg %p201
        %p712 = pneg %p198
        %p713 = scmp.lt.s32.totalorder %s43, 1
        %s714 = scalar_select %p713, %s43, 1
        %s715 = scalar_lea.vmem %s6, %s714
        %p716 = pneg %p227
        %p717 = pneg %p224
        %p718 = scmp.lt.s32.totalorder %s43, 1
        %s719 = scalar_select %p718, %s43, 1
        %s720 = scalar_lea.vmem %s7, %s719
        %p721 = pneg %p253
        %p722 = pneg %p250
        %p723 = scmp.lt.s32.totalorder %s43, 1
        %s724 = scalar_select %p723, %s43, 1
        %s725 = scalar_lea.vmem %s8, %s724
        %p726 = pneg %p279
        %p727 = pneg %p276
        %s728 = sand.u32 %s38, 1
        %s729 = scalar_lea.sflag [#allocation8], %s728
        %s730 = sand.u32 %s292, 1
        %s731 = smul.addr %s730, 16
        %s732 = scalar_lea.vmem [#allocation9], %s731
        %p733 = pneg %p305
        %p734 = pneg %p302
        %s735 = sand.u32 %s318, 1
        %s736 = scalar_lea.sflag [#allocation11], %s735
        %s737 = sand.u32 %s318, 1
        %s738 = scalar_lea.vmem [#allocation10], %s737
        %p739 = pneg %p331
        %p740 = pneg %p328
        %p741 = scmp.lt.s32.totalorder %s43, 1
        %s742 = scalar_select %p741, %s43, 1
        %s743 = smul.addr %s742, 8
        %s744 = smul.addr %s743, 4
        %s745 = scalar_lea.vmem %s11, %s744
        %p746 = pneg %p357
        %p747 = pneg %p354
        %p748 = scmp.lt.s32.totalorder %s43, 1
        %s749 = scalar_select %p748, %s43, 1
        %s750 = scalar_lea.vmem %s12, %s749
        %p751 = pneg %p383
        %p752 = pneg %p380
        %p753 = scmp.lt.s32.totalorder %s43, 1
        %s754 = scalar_select %p753, %s43, 1
        %s755 = scalar_lea.vmem %s13, %s754
        %p756 = pneg %p409
        %p757 = pneg %p406
        %p758 = scmp.lt.s32.totalorder %s43, 1
        %s759 = scalar_select %p758, %s43, 1
        %s760 = scalar_lea.vmem %s14, %s759
        %p761 = pneg %p435
        %p762 = pneg %p432
        %p763 = pneg %p461
        %p764 = pneg %p458
        %s765 = sand.u32 %s448, 1
        %s766 = scalar_lea.sflag [#allocation6], %s765
        %s767 = sand.u32 %s448, 1
        %s768 = smul.addr %s767, 8
        %s769 = scalar_lea.vmem [#allocation12], %s768
        %p770 = scmp.lt.s32.totalorder %s42, 1
        %s771 = scalar_select %p770, %s42, 1
        %s772 = scalar_lea.vmem %s1, %s771
        %p773 = scmp.lt.s32.totalorder %s43, 1
        %s774 = scalar_select %p773, %s43, 1
        %s775 = smul.addr %s774, 4
        %s776 = smul.addr %s775, 4
        %s777 = scalar_lea.vmem %s2, %s776
        %p778 = scmp.lt.s32.totalorder %s43, 1
        %s779 = scalar_select %p778, %s43, 1
        %s780 = smul.addr %s779, 4
        %s781 = smul.addr %s780, 4
        %s782 = scalar_lea.vmem %s3, %s781
        %p783 = scmp.lt.s32.totalorder %s43, 1
        %s784 = scalar_select %p783, %s43, 1
        %s785 = smul.addr %s784, 4
        %s786 = smul.addr %s785, 4
        %s787 = scalar_lea.vmem %s4, %s786
        %p788 = scmp.lt.s32.totalorder %s43, 1
        %s789 = scalar_select %p788, %s43, 1
        %s790 = scalar_lea.vmem %s6, %s789
        %p791 = scmp.lt.s32.totalorder %s43, 1
        %s792 = scalar_select %p791, %s43, 1
        %s793 = scalar_lea.vmem %s7, %s792
        %p794 = scmp.lt.s32.totalorder %s43, 1
        %s795 = scalar_select %p794, %s43, 1
        %s796 = scalar_lea.vmem %s8, %s795
        %p797 = scmp.lt.s32.totalorder %s43, 1
        %s798 = scalar_select %p797, %s43, 1
        %s799 = smul.addr %s798, 8
        %s800 = smul.addr %s799, 4
        %s801 = scalar_lea.vmem %s11, %s800
        %p802 = scmp.lt.s32.totalorder %s43, 1
        %s803 = scalar_select %p802, %s43, 1
        %s804 = scalar_lea.vmem %s12, %s803
        %p805 = scmp.lt.s32.totalorder %s43, 1
        %s806 = scalar_select %p805, %s43, 1
        %s807 = scalar_lea.vmem %s13, %s806
        %p808 = scmp.lt.s32.totalorder %s43, 1
        %s809 = scalar_select %p808, %s43, 1
        %s810 = scalar_lea.vmem %s14, %s809
        %p812 = scmp.eq.s32.totalorder %s43, 0
        // Predicated region
        $region97: #{tpu_custom_call.1} parent=79 // pred_check
          %p813 = pneg %p812
        $region98: #{tpu_custom_call.1} parent=79 // pred_check_branch
          %815 = sbr.rel (%p813) target = $region100
        $region99: #{tpu_custom_call.1} parent=79 // pred_region
          %v816 = vld [vmem:[%s642] sm:$0xff]
          %vm817 = vcmask 261120
          %818 = vst.msk [vmem:[#allocation2] sm:$0xff] %vm817, %v816
        $region100: #{tpu_custom_call.1} parent=79 // pred_fallthru
          _
        %v819 = vld [vmem:[#allocation2] sm:$0xff]
        %v820 = vpack.c.bf16 %v819, %v819
        %v821 = vld [vmem:[%s777] sm:$0xf]
        %v822 = vld [vmem:[%s777 + $0x4] sm:$0xf]
        %v823 = vld [vmem:[%s777 + $0x8] sm:$0xf]
        %v824 = vld [vmem:[%s777 + $0xc] sm:$0xf]
        %v829 = vunpack.c.l.b16 %v821
        %v830 = vunpack.c.l.b16 %v822
        %v831 = vunpack.c.l.b16 %v823
        %v832 = vunpack.c.l.b16 %v824
        %v833 = vpack.c.b16 %v830, %v829
        %v834 = vpack.c.b16 %v832, %v831
        %vm837 = vcmask 261120
        %v839 = vsel %vm837, %v820, 0
        %841 = vmatprep.subr.bf16.mxu0 0
        %842 = vmatpush1.bf16.msra.mxu0 %v833
        %843 = vmatprep.subr.bf16.mxu0 0
        %844 = vmatpush1.bf16.msra.mxu0 %v834
        %845 = vmatprep.subr.bf16.mxu0 0
        %846 = vmatpush1.bf16.msra.mxu0 0
        %847 = vmatprep.subr.bf16.mxu0 0
        %848 = vmatpush1.bf16.msra.mxu0 0
        %849 = vmatprep.subr.bf16.mxu0 0
        %850 = vmatpush1.bf16.msra.mxu0 0
        %851 = vmatprep.subr.bf16.mxu0 0
        %852 = vmatpush1.bf16.msra.mxu0 0
        %853 = vmatprep.subr.bf16.mxu0 0
        %854 = vmatpush1.bf16.msra.mxu0 0
        %855 = vmatprep.subr.bf16.mxu0 0
        %856 = vmatpush1.bf16.msra.mxu0 0
        %857 = vmatprep.subr.bf16.mxu0 0
        %858 = vmatpush1.bf16.msra.mxu0 0
        %859 = vmatprep.subr.bf16.mxu0 0
        %860 = vmatpush1.bf16.msra.mxu0 0
        %861 = vmatprep.subr.bf16.mxu0 0
        %862 = vmatpush1.bf16.msra.mxu0 0
        %863 = vmatprep.subr.bf16.mxu0 0
        %864 = vmatpush1.bf16.msra.mxu0 0
        %865 = vmatprep.subr.bf16.mxu0 0
        %866 = vmatpush1.bf16.msra.mxu0 0
        %867 = vmatprep.subr.bf16.mxu0 0
        %868 = vmatpush1.bf16.msra.mxu0 0
        %869 = vmatprep.subr.bf16.mxu0 0
        %870 = vmatpush1.bf16.msra.mxu0 0
        %871 = vmatprep.subr.bf16.mxu0 0
        %872 = vmatpush1.bf16.msra.mxu0 0
        %873 = vmatprep.mubr.bf16.mxu0 0
        %874 = vmatmul.mubr.bf16.gmra.mrb[0].mxu0 %v839
        %v875 = vpop.f32.mrb[0].mxu0
        %v876 = vadd.f32 0.0, %v875
        %v877 = vpop.f32.mrb[0].mxu0
        %v878 = vpop.f32.mrb[0].mxu0
        %v879 = vpop.f32.mrb[0].mxu0
        %880 = vdwg.mxu0
        %v881 = vpack.c.bf16 %v876, %v876
        %v882 = vld [vmem:[%s782] sm:$0xf]
        %v883 = vld [vmem:[%s782 + $0x4] sm:$0xf]
        %v884 = vld [vmem:[%s782 + $0x8] sm:$0xf]
        %v885 = vld [vmem:[%s782 + $0xc] sm:$0xf]
        %v890 = vunpack.c.l.b16 %v882
        %v891 = vunpack.c.l.b16 %v883
        %v892 = vunpack.c.l.b16 %v884
        %v893 = vunpack.c.l.b16 %v885
        %v894 = vpack.c.b16 %v891, %v890
        %v895 = vpack.c.b16 %v893, %v892
        %898 = vmatprep.subr.bf16.mxu0 0
        %899 = vmatpush1.bf16.msra.mxu0 %v894
        %900 = vmatprep.subr.bf16.mxu0 0
        %901 = vmatpush1.bf16.msra.mxu0 %v895
        %902 = vmatprep.subr.bf16.mxu0 0
        %903 = vmatpush1.bf16.msra.mxu0 0
        %904 = vmatprep.subr.bf16.mxu0 0
        %905 = vmatpush1.bf16.msra.mxu0 0
        %906 = vmatprep.subr.bf16.mxu0 0
        %907 = vmatpush1.bf16.msra.mxu0 0
        %908 = vmatprep.subr.bf16.mxu0 0
        %909 = vmatpush1.bf16.msra.mxu0 0
        %910 = vmatprep.subr.bf16.mxu0 0
        %911 = vmatpush1.bf16.msra.mxu0 0
        %912 = vmatprep.subr.bf16.mxu0 0
        %913 = vmatpush1.bf16.msra.mxu0 0
        %914 = vmatprep.subr.bf16.mxu0 0
        %915 = vmatpush1.bf16.msra.mxu0 0
        %916 = vmatprep.subr.bf16.mxu0 0
        %917 = vmatpush1.bf16.msra.mxu0 0
        %918 = vmatprep.subr.bf16.mxu0 0
        %919 = vmatpush1.bf16.msra.mxu0 0
        %920 = vmatprep.subr.bf16.mxu0 0
        %921 = vmatpush1.bf16.msra.mxu0 0
        %922 = vmatprep.subr.bf16.mxu0 0
        %923 = vmatpush1.bf16.msra.mxu0 0
        %924 = vmatprep.subr.bf16.mxu0 0
        %925 = vmatpush1.bf16.msra.mxu0 0
        %926 = vmatprep.subr.bf16.mxu0 0
        %927 = vmatpush1.bf16.msra.mxu0 0
        %928 = vmatprep.subr.bf16.mxu0 0
        %929 = vmatpush1.bf16.msra.mxu0 0
        %930 = vmatprep.mubr.bf16.mxu0 0
        %931 = vmatmul.mubr.bf16.gmra.mrb[0].mxu0 %v839
        %v932 = vpop.f32.mrb[0].mxu0
        %v933 = vadd.f32 0.0, %v932
        %v934 = vpop.f32.mrb[0].mxu0
        %v935 = vpop.f32.mrb[0].mxu0
        %v936 = vpop.f32.mrb[0].mxu0
        %937 = vdwg.mxu0
        %v938 = vpack.c.bf16 %v933, %v933
        %v939 = vld [vmem:[%s787] sm:$0xf]
        %v940 = vld [vmem:[%s787 + $0x4] sm:$0xf]
        %v941 = vld [vmem:[%s787 + $0x8] sm:$0xf]
        %v942 = vld [vmem:[%s787 + $0xc] sm:$0xf]
        %v947 = vunpack.c.l.b16 %v939
        %v948 = vunpack.c.l.b16 %v940
        %v949 = vunpack.c.l.b16 %v941
        %v950 = vunpack.c.l.b16 %v942
        %v951 = vpack.c.b16 %v948, %v947
        %v952 = vpack.c.b16 %v950, %v949
        %955 = vmatprep.subr.bf16.mxu0 0
        %956 = vmatpush1.bf16.msra.mxu0 %v951
        %957 = vmatprep.subr.bf16.mxu0 0
        %958 = vmatpush1.bf16.msra.mxu0 %v952
        %959 = vmatprep.subr.bf16.mxu0 0
        %960 = vmatpush1.bf16.msra.mxu0 0
        %961 = vmatprep.subr.bf16.mxu0 0
        %962 = vmatpush1.bf16.msra.mxu0 0
        %963 = vmatprep.subr.bf16.mxu0 0
        %964 = vmatpush1.bf16.msra.mxu0 0
        %965 = vmatprep.subr.bf16.mxu0 0
        %966 = vmatpush1.bf16.msra.mxu0 0
        %967 = vmatprep.subr.bf16.mxu0 0
        %968 = vmatpush1.bf16.msra.mxu0 0
        %969 = vmatprep.subr.bf16.mxu0 0
        %970 = vmatpush1.bf16.msra.mxu0 0
        %971 = vmatprep.subr.bf16.mxu0 0
        %972 = vmatpush1.bf16.msra.mxu0 0
        %973 = vmatprep.subr.bf16.mxu0 0
        %974 = vmatpush1.bf16.msra.mxu0 0
        %975 = vmatprep.subr.bf16.mxu0 0
        %976 = vmatpush1.bf16.msra.mxu0 0
        %977 = vmatprep.subr.bf16.mxu0 0
        %978 = vmatpush1.bf16.msra.mxu0 0
        %979 = vmatprep.subr.bf16.mxu0 0
        %980 = vmatpush1.bf16.msra.mxu0 0
        %981 = vmatprep.subr.bf16.mxu0 0
        %982 = vmatpush1.bf16.msra.mxu0 0
        %983 = vmatprep.subr.bf16.mxu0 0
        %984 = vmatpush1.bf16.msra.mxu0 0
        %985 = vmatprep.subr.bf16.mxu0 0
        %986 = vmatpush1.bf16.msra.mxu0 0
        %987 = vmatprep.mubr.bf16.mxu0 0
        %988 = vmatmul.mubr.bf16.gmra.mrb[0].mxu0 %v839
        %v989 = vpop.f32.mrb[0].mxu0
        %v990 = vadd.f32 0.0, %v989
        %v991 = vpop.f32.mrb[0].mxu0
        %v992 = vpop.f32.mrb[0].mxu0
        %v993 = vpop.f32.mrb[0].mxu0
        %994 = vdwg.mxu0
        %v995 = vpack.c.bf16 %v990, %v990
        %v996 = vld [vmem:[%s772] sm:$0x1]
        %v998 = vlaneseq
        %v999 = vshrl.u32 %v998, 7
        %v1000 = vsub.s32 0, %v999
        %v1001 = vrot.slane %v996, %v1000
        %vm1003 = vcmask 130048
        %v1005 = vsel %vm1003, %v881, 0
        %v1008 = vsel %vm1003, %v938, 0
        %1010 = vmatprep.subr.bf16.mxu0 0
        %1011 = vmatpush1.bf16.xpose.msra.mxu0 %v1008
        %1012 = vmatprep.subr.bf16.mxu0 0
        %1013 = vmatpush1.bf16.xpose.msra.mxu0 0
        %1014 = vmatprep.subr.bf16.mxu0 0
        %1015 = vmatpush1.bf16.xpose.msra.mxu0 0
        %1016 = vmatprep.subr.bf16.mxu0 0
        %1017 = vmatpush1.bf16.xpose.msra.mxu0 0
        %1018 = vmatprep.subr.bf16.mxu0 0
        %1019 = vmatpush1.bf16.xpose.msra.mxu0 0
        %1020 = vmatprep.subr.bf16.mxu0 0
        %1021 = vmatpush1.bf16.xpose.msra.mxu0 0
        %1022 = vmatprep.subr.bf16.mxu0 0
        %1023 = vmatpush1.bf16.xpose.msra.mxu0 0
        %1024 = vmatprep.subr.bf16.mxu0 0
        %1025 = vmatpush1.bf16.xpose.msra.mxu0 0
        %1026 = vmatprep.subr.bf16.mxu0 0
        %1027 = vmatpush1.bf16.xpose.msra.mxu0 0
        %1028 = vmatprep.subr.bf16.mxu0 0
        %1029 = vmatpush1.bf16.xpose.msra.mxu0 0
        %1030 = vmatprep.subr.bf16.mxu0 0
        %1031 = vmatpush1.bf16.xpose.msra.mxu0 0
        %1032 = vmatprep.subr.bf16.mxu0 0
        %1033 = vmatpush1.bf16.xpose.msra.mxu0 0
        %1034 = vmatprep.subr.bf16.mxu0 0
        %1035 = vmatpush1.bf16.xpose.msra.mxu0 0
        %1036 = vmatprep.subr.bf16.mxu0 0
        %1037 = vmatpush1.bf16.xpose.msra.mxu0 0
        %1038 = vmatprep.subr.bf16.mxu0 0
        %1039 = vmatpush1.bf16.xpose.msra.mxu0 0
        %1040 = vmatprep.subr.bf16.mxu0 0
        %1041 = vmatpush1.bf16.xpose.msra.mxu0 0
        %1042 = vmatprep.mubr.bf16.mxu0 0
        %1043 = vmatmul.mubr.bf16.gmra.mrb[0].mxu0 %v1005
        %v1044 = vpop.f32.mrb[0].mxu0
        %v1045 = vadd.f32 %v1001, %v1044
        %v1046 = vpop.f32.mrb[0].mxu0
        %v1047 = vpop.f32.mrb[0].mxu0
        %v1048 = vpop.f32.mrb[0].mxu0
        %1049 = vdwg.mxu0
        %vm1050 = vcmask 64512
        %v1051 = vsel %vm1050, %v1045, -inf
        %1052 = vmax.xlane.f32.xlu0 %v1051
        %v1053 = vpop.xlane.xlu0 %1052
        %v1054 = vsub.f32 %v1045, %v1053
        %v1055 = vmul.f32 %v1054, 1.442695
        %v1056 = vpow.pop %v1055
        %v1057 = vsel %vm1050, %v1056, 0.0
        %1058 = vadd.xlane.f32.xlu0 %v1057
        %v1059 = vpop.xlane.xlu0 %1058
        %v1060 = vrcp.pop %v1059
        %v1061 = vmul.f32 %v1056, %v1060
        %v1062 = vpack.c.bf16 %v1061, %v1061
        %v1064 = vsel %vm1050, %v1062, 0
        %vm1066 = vcmask 1043456
        %v1068 = vsel %vm1066, %v995, 0
        %1070 = vmatprep.subr.bf16.mxu0 0
        %1071 = vmatpush1.bf16.msra.mxu0 %v1068
        %1072 = vmatprep.subr.bf16.mxu0 0
        %1073 = vmatpush1.bf16.msra.mxu0 0
        %1074 = vmatprep.subr.bf16.mxu0 0
        %1075 = vmatpush1.bf16.msra.mxu0 0
        %1076 = vmatprep.subr.bf16.mxu0 0
        %1077 = vmatpush1.bf16.msra.mxu0 0
        %1078 = vmatprep.subr.bf16.mxu0 0
        %1079 = vmatpush1.bf16.msra.mxu0 0
        %1080 = vmatprep.subr.bf16.mxu0 0
        %1081 = vmatpush1.bf16.msra.mxu0 0
        %1082 = vmatprep.subr.bf16.mxu0 0
        %1083 = vmatpush1.bf16.msra.mxu0 0
        %1084 = vmatprep.subr.bf16.mxu0 0
        %1085 = vmatpush1.bf16.msra.mxu0 0
        %1086 = vmatprep.subr.bf16.mxu0 0
        %1087 = vmatpush1.bf16.msra.mxu0 0
        %1088 = vmatprep.subr.bf16.mxu0 0
        %1089 = vmatpush1.bf16.msra.mxu0 0
        %1090 = vmatprep.subr.bf16.mxu0 0
        %1091 = vmatpush1.bf16.msra.mxu0 0
        %1092 = vmatprep.subr.bf16.mxu0 0
        %1093 = vmatpush1.bf16.msra.mxu0 0
        %1094 = vmatprep.subr.bf16.mxu0 0
        %1095 = vmatpush1.bf16.msra.mxu0 0
        %1096 = vmatprep.subr.bf16.mxu0 0
        %1097 = vmatpush1.bf16.msra.mxu0 0
        %1098 = vmatprep.subr.bf16.mxu0 0
        %1099 = vmatpush1.bf16.msra.mxu0 0
        %1100 = vmatprep.subr.bf16.mxu0 0
        %1101 = vmatpush1.bf16.msra.mxu0 0
        %1102 = vmatprep.mubr.bf16.mxu0 0
        %1103 = vmatmul.mubr.bf16.gmra.mrb[0].mxu0 %v1064
        %v1104 = vpop.f32.mrb[0].mxu0
        %v1105 = vadd.f32 0.0, %v1104
        %v1106 = vpop.f32.mrb[0].mxu0
        %v1107 = vpop.f32.mrb[0].mxu0
        %v1108 = vpop.f32.mrb[0].mxu0
        %1109 = vdwg.mxu0
        %1110 = vst.msk [vmem:[#allocation3] sm:$0xff] %vm1003, %v1105
        %1112 = vrot.lane.b32.xlu0 %v881, 112
        %v1113 = vpop.permute.xlu0 %1112
        %1115 = vrot.lane.b32.xlu0 %v938, 112
        %v1116 = vpop.permute.xlu0 %1115
        %v1118 = vsel %vm1003, %v1113, 0
        %v1121 = vsel %vm1003, %v1116, 0
        %1123 = vmatprep.subr.bf16.mxu0 0
        %1124 = vmatpush1.bf16.xpose.msra.mxu0 %v1121
        %1125 = vmatprep.subr.bf16.mxu0 0
        %1126 = vmatpush1.bf16.xpose.msra.mxu0 0
        %1127 = vmatprep.subr.bf16.mxu0 0
        %1128 = vmatpush1.bf16.xpose.msra.mxu0 0
        %1129 = vmatprep.subr.bf16.mxu0 0
        %1130 = vmatpush1.bf16.xpose.msra.mxu0 0
        %1131 = vmatprep.subr.bf16.mxu0 0
        %1132 = vmatpush1.bf16.xpose.msra.mxu0 0
        %1133 = vmatprep.subr.bf16.mxu0 0
        %1134 = vmatpush1.bf16.xpose.msra.mxu0 0
        %1135 = vmatprep.subr.bf16.mxu0 0
        %1136 = vmatpush1.bf16.xpose.msra.mxu0 0
        %1137 = vmatprep.subr.bf16.mxu0 0
        %1138 = vmatpush1.bf16.xpose.msra.mxu0 0
        %1139 = vmatprep.subr.bf16.mxu0 0
        %1140 = vmatpush1.bf16.xpose.msra.mxu0 0
        %1141 = vmatprep.subr.bf16.mxu0 0
        %1142 = vmatpush1.bf16.xpose.msra.mxu0 0
        %1143 = vmatprep.subr.bf16.mxu0 0
        %1144 = vmatpush1.bf16.xpose.msra.mxu0 0
        %1145 = vmatprep.subr.bf16.mxu0 0
        %1146 = vmatpush1.bf16.xpose.msra.mxu0 0
        %1147 = vmatprep.subr.bf16.mxu0 0
        %1148 = vmatpush1.bf16.xpose.msra.mxu0 0
        %1149 = vmatprep.subr.bf16.mxu0 0
        %1150 = vmatpush1.bf16.xpose.msra.mxu0 0
        %1151 = vmatprep.subr.bf16.mxu0 0
        %1152 = vmatpush1.bf16.xpose.msra.mxu0 0
        %1153 = vmatprep.subr.bf16.mxu0 0
        %1154 = vmatpush1.bf16.xpose.msra.mxu0 0
        %1155 = vmatprep.mubr.bf16.mxu0 0
        %1156 = vmatmul.mubr.bf16.gmra.mrb[0].mxu0 %v1118
        %v1157 = vpop.f32.mrb[0].mxu0
        %v1158 = vadd.f32 %v1001, %v1157
        %v1159 = vpop.f32.mrb[0].mxu0
        %v1160 = vpop.f32.mrb[0].mxu0
        %v1161 = vpop.f32.mrb[0].mxu0
        %1162 = vdwg.mxu0
        %v1163 = vsel %vm1050, %v1158, -inf
        %1164 = vmax.xlane.f32.xlu0 %v1163
        %v1165 = vpop.xlane.xlu0 %1164
        %v1166 = vsub.f32 %v1158, %v1165
        %v1167 = vmul.f32 %v1166, 1.442695
        %v1168 = vpow.pop %v1167
        %v1169 = vsel %vm1050, %v1168, 0.0
        %1170 = vadd.xlane.f32.xlu0 %v1169
        %v1171 = vpop.xlane.xlu0 %1170
        %v1172 = vrcp.pop %v1171
        %v1173 = vmul.f32 %v1168, %v1172
        %v1174 = vpack.c.bf16 %v1173, %v1173
        %1176 = vrot.lane.b32.xlu0 %v995, 112
        %v1177 = vpop.permute.xlu0 %1176
        %v1179 = vsel %vm1050, %v1174, 0
        %v1182 = vsel %vm1066, %v1177, 0
        %1184 = vmatprep.subr.bf16.mxu0 0
        %1185 = vmatpush1.bf16.msra.mxu0 %v1182
        %1186 = vmatprep.subr.bf16.mxu0 0
        %1187 = vmatpush1.bf16.msra.mxu0 0
        %1188 = vmatprep.subr.bf16.mxu0 0
        %1189 = vmatpush1.bf16.msra.mxu0 0
        %1190 = vmatprep.subr.bf16.mxu0 0
        %1191 = vmatpush1.bf16.msra.mxu0 0
        %1192 = vmatprep.subr.bf16.mxu0 0
        %1193 = vmatpush1.bf16.msra.mxu0 0
        %1194 = vmatprep.subr.bf16.mxu0 0
        %1195 = vmatpush1.bf16.msra.mxu0 0
        %1196 = vmatprep.subr.bf16.mxu0 0
        %1197 = vmatpush1.bf16.msra.mxu0 0
        %1198 = vmatprep.subr.bf16.mxu0 0
        %1199 = vmatpush1.bf16.msra.mxu0 0
        %1200 = vmatprep.subr.bf16.mxu0 0
        %1201 = vmatpush1.bf16.msra.mxu0 0
        %1202 = vmatprep.subr.bf16.mxu0 0
        %1203 = vmatpush1.bf16.msra.mxu0 0
        %1204 = vmatprep.subr.bf16.mxu0 0
        %1205 = vmatpush1.bf16.msra.mxu0 0
        %1206 = vmatprep.subr.bf16.mxu0 0
        %1207 = vmatpush1.bf16.msra.mxu0 0
        %1208 = vmatprep.subr.bf16.mxu0 0
        %1209 = vmatpush1.bf16.msra.mxu0 0
        %1210 = vmatprep.subr.bf16.mxu0 0
        %1211 = vmatpush1.bf16.msra.mxu0 0
        %1212 = vmatprep.subr.bf16.mxu0 0
        %1213 = vmatpush1.bf16.msra.mxu0 0
        %1214 = vmatprep.subr.bf16.mxu0 0
        %1215 = vmatpush1.bf16.msra.mxu0 0
        %1216 = vmatprep.mubr.bf16.mxu0 0
        %1217 = vmatmul.mubr.bf16.gmra.mrb[0].mxu0 %v1179
        %v1218 = vpop.f32.mrb[0].mxu0
        %v1219 = vadd.f32 0.0, %v1218
        %v1220 = vpop.f32.mrb[0].mxu0
        %v1221 = vpop.f32.mrb[0].mxu0
        %v1222 = vpop.f32.mrb[0].mxu0
        %1223 = vdwg.mxu0
        %1225 = vrot.lane.b32.xlu0 %v1219, 16
        %v1226 = vpop.permute.xlu0 %1225
        %vm1228 = vcmask 261248
        %1229 = vst.msk [vmem:[#allocation3] sm:$0xff] %vm1228, %v1226
        %v1230 = vld [vmem:[#allocation3] sm:$0xff]
        %v1231 = vpack.c.bf16 %v1230, %v1230
        %v1232 = vld [vmem:[%s651] sm:$0xf]
        %v1233 = vld [vmem:[%s651 + $0x4] sm:$0xf]
        %v1234 = vld [vmem:[%s651 + $0x8] sm:$0xf]
        %v1235 = vld [vmem:[%s651 + $0xc] sm:$0xf]
        %v1236 = vld [vmem:[%s790] sm:$0x1]
        %v1238 = vlaneseq
        %v1239 = vshrl.u32 %v1238, 7
        %v1240 = vsub.s32 0, %v1239
        %v1241 = vrot.slane %v1236, %v1240
        %v1247 = vunpack.c.l.b16 %v1232
        %v1248 = vunpack.c.l.b16 %v1233
        %v1249 = vunpack.c.l.b16 %v1234
        %v1250 = vunpack.c.l.b16 %v1235
        %v1251 = vpack.c.b16 %v1248, %v1247
        %v1252 = vpack.c.b16 %v1250, %v1249
        %v1256 = vsel %vm837, %v1231, 0
        %1258 = vmatprep.subr.bf16.mxu0 0
        %1259 = vmatpush1.bf16.msra.mxu0 %v1251
        %1260 = vmatprep.subr.bf16.mxu0 0
        %1261 = vmatpush1.bf16.msra.mxu0 %v1252
        %1262 = vmatprep.subr.bf16.mxu0 0
        %1263 = vmatpush1.bf16.msra.mxu0 0
        %1264 = vmatprep.subr.bf16.mxu0 0
        %1265 = vmatpush1.bf16.msra.mxu0 0
        %1266 = vmatprep.subr.bf16.mxu0 0
        %1267 = vmatpush1.bf16.msra.mxu0 0
        %1268 = vmatprep.subr.bf16.mxu0 0
        %1269 = vmatpush1.bf16.msra.mxu0 0
        %1270 = vmatprep.subr.bf16.mxu0 0
        %1271 = vmatpush1.bf16.msra.mxu0 0
        %1272 = vmatprep.subr.bf16.mxu0 0
        %1273 = vmatpush1.bf16.msra.mxu0 0
        %1274 = vmatprep.subr.bf16.mxu0 0
        %1275 = vmatpush1.bf16.msra.mxu0 0
        %1276 = vmatprep.subr.bf16.mxu0 0
        %1277 = vmatpush1.bf16.msra.mxu0 0
        %1278 = vmatprep.subr.bf16.mxu0 0
        %1279 = vmatpush1.bf16.msra.mxu0 0
        %1280 = vmatprep.subr.bf16.mxu0 0
        %1281 = vmatpush1.bf16.msra.mxu0 0
        %1282 = vmatprep.subr.bf16.mxu0 0
        %1283 = vmatpush1.bf16.msra.mxu0 0
        %1284 = vmatprep.subr.bf16.mxu0 0
        %1285 = vmatpush1.bf16.msra.mxu0 0
        %1286 = vmatprep.subr.bf16.mxu0 0
        %1287 = vmatpush1.bf16.msra.mxu0 0
        %1288 = vmatprep.subr.bf16.mxu0 0
        %1289 = vmatpush1.bf16.msra.mxu0 0
        %1290 = vmatprep.mubr.bf16.mxu0 0
        %1291 = vmatmul.mubr.bf16.gmra.mrb[0].mxu0 %v1256
        %v1292 = vpop.f32.mrb[0].mxu0
        %v1293 = vadd.f32 %v1241, %v1292
        %v1294 = vpop.f32.mrb[0].mxu0
        %v1295 = vpop.f32.mrb[0].mxu0
        %v1296 = vpop.f32.mrb[0].mxu0
        %1297 = vdwg.mxu0
        %v1298 = vadd.f32 %v1293, %v819
        %v1299 = vld [vmem:[%s793] sm:$0x1]
        %v1300 = vld [vmem:[%s796] sm:$0x1]
        %v1301 = vsel %vm837, %v1298, 0.0
        %1302 = vadd.xlane.f32.xlu0 %v1301
        %v1303 = vpop.xlane.xlu0 %1302
        %v1304 = vrcp.pop 32.0
        %v1305 = vmul.f32 %v1303, %v1304
        %v1306 = vsub.f32 %v1298, %v1305
        %v1307 = vmul.f32 %v1306, %v1306
        %v1308 = vsel %vm837, %v1307, 0.0
        %1309 = vadd.xlane.f32.xlu0 %v1308
        %v1310 = vpop.xlane.xlu0 %1309
        %v1311 = vmul.f32 %v1310, %v1304
        %v1312 = vadd.f32 %v1311, 1e-06
        %v1313 = vrsqrt.pop %v1312
        %v1314 = vmul.f32 %v1306, %v1313
        %v1316 = vlaneseq
        %v1317 = vshrl.u32 %v1316, 7
        %v1318 = vsub.s32 0, %v1317
        %v1319 = vrot.slane %v1299, %v1318
        %v1321 = vmul.f32 %v1314, %v1319
        %v1323 = vlaneseq
        %v1324 = vshrl.u32 %v1323, 7
        %v1325 = vsub.s32 0, %v1324
        %v1326 = vrot.slane %v1300, %v1325
        %v1328 = vadd.f32 %v1321, %v1326
        %v1329 = vpack.c.bf16 %v1328, %v1328
        %v1330 = vld [vmem:[%s660] sm:$0xf]
        %v1331 = vld [vmem:[%s660 + $0x4] sm:$0xf]
        %v1332 = vld [vmem:[%s660 + $0x8] sm:$0xf]
        %v1333 = vld [vmem:[%s660 + $0xc] sm:$0xf]
        %v1334 = vld [vmem:[%s668] sm:$0x1]
        %v1336 = vlaneseq
        %v1337 = vshrl.u32 %v1336, 7
        %v1338 = vsub.s32 0, %v1337
        %v1339 = vrot.slane %v1334, %v1338
        %v1345 = vunpack.c.l.b16 %v1330
        %v1346 = vunpack.c.l.b16 %v1331
        %v1347 = vunpack.c.l.b16 %v1332
        %v1348 = vunpack.c.l.b16 %v1333
        %v1349 = vpack.c.b16 %v1346, %v1345
        %v1350 = vpack.c.b16 %v1348, %v1347
        %v1354 = vsel %vm837, %v1329, 0
        %1356 = vmatprep.subr.bf16.mxu0 0
        %1357 = vmatpush1.bf16.msra.mxu0 %v1349
        %1358 = vmatprep.subr.bf16.mxu0 0
        %1359 = vmatpush1.bf16.msra.mxu0 %v1350
        %1360 = vmatprep.subr.bf16.mxu0 0
        %1361 = vmatpush1.bf16.msra.mxu0 0
        %1362 = vmatprep.subr.bf16.mxu0 0
        %1363 = vmatpush1.bf16.msra.mxu0 0
        %1364 = vmatprep.subr.bf16.mxu0 0
        %1365 = vmatpush1.bf16.msra.mxu0 0
        %1366 = vmatprep.subr.bf16.mxu0 0
        %1367 = vmatpush1.bf16.msra.mxu0 0
        %1368 = vmatprep.subr.bf16.mxu0 0
        %1369 = vmatpush1.bf16.msra.mxu0 0
        %1370 = vmatprep.subr.bf16.mxu0 0
        %1371 = vmatpush1.bf16.msra.mxu0 0
        %1372 = vmatprep.subr.bf16.mxu0 0
        %1373 = vmatpush1.bf16.msra.mxu0 0
        %1374 = vmatprep.subr.bf16.mxu0 0
        %1375 = vmatpush1.bf16.msra.mxu0 0
        %1376 = vmatprep.subr.bf16.mxu0 0
        %1377 = vmatpush1.bf16.msra.mxu0 0
        %1378 = vmatprep.subr.bf16.mxu0 0
        %1379 = vmatpush1.bf16.msra.mxu0 0
        %1380 = vmatprep.subr.bf16.mxu0 0
        %1381 = vmatpush1.bf16.msra.mxu0 0
        %1382 = vmatprep.subr.bf16.mxu0 0
        %1383 = vmatpush1.bf16.msra.mxu0 0
        %1384 = vmatprep.subr.bf16.mxu0 0
        %1385 = vmatpush1.bf16.msra.mxu0 0
        %1386 = vmatprep.subr.bf16.mxu0 0
        %1387 = vmatpush1.bf16.msra.mxu0 0
        %1388 = vmatprep.mubr.bf16.mxu0 0
        %1389 = vmatmul.mubr.bf16.gmra.mrb[0].mxu0 %v1354
        %v1390 = vpop.f32.mrb[0].mxu0
        %v1391 = vadd.f32 %v1339, %v1390
        %v1392 = vpop.f32.mrb[0].mxu0
        %v1393 = vpop.f32.mrb[0].mxu0
        %v1394 = vpop.f32.mrb[0].mxu0
        %1395 = vdwg.mxu0
        %v1396 = vmax.f32 %v1391, 0.0
        %v1397 = vpack.c.bf16 %v1396, %v1396
        %v1398 = vld [vmem:[%s801] sm:$0xf]
        %v1399 = vld [vmem:[%s801 + $0x4] sm:$0xf]
        %v1400 = vld [vmem:[%s801 + $0x8] sm:$0xf]
        %v1401 = vld [vmem:[%s801 + $0xc] sm:$0xf]
        %v1402 = vld [vmem:[%s801 + $0x10] sm:$0xf]
        %v1403 = vld [vmem:[%s801 + $0x14] sm:$0xf]
        %v1404 = vld [vmem:[%s801 + $0x18] sm:$0xf]
        %v1405 = vld [vmem:[%s801 + $0x1c] sm:$0xf]
        %v1406 = vld [vmem:[%s804] sm:$0x1]
        %v1408 = vlaneseq
        %v1409 = vshrl.u32 %v1408, 7
        %v1410 = vsub.s32 0, %v1409
        %v1411 = vrot.slane %v1406, %v1410
        %v1421 = vunpack.c.l.b16 %v1398
        %v1422 = vunpack.c.l.b16 %v1399
        %v1423 = vunpack.c.l.b16 %v1400
        %v1424 = vunpack.c.l.b16 %v1401
        %v1425 = vunpack.c.l.b16 %v1402
        %v1426 = vunpack.c.l.b16 %v1403
        %v1427 = vunpack.c.l.b16 %v1404
        %v1428 = vunpack.c.l.b16 %v1405
        %v1429 = vpack.c.b16 %v1422, %v1421
        %v1430 = vpack.c.b16 %v1424, %v1423
        %v1431 = vpack.c.b16 %v1426, %v1425
        %v1432 = vpack.c.b16 %v1428, %v1427
        %vm1437 = vcmask 523264
        %v1439 = vsel %vm1437, %v1397, 0
        %1441 = vmatprep.subr.bf16.mxu0 0
        %1442 = vmatpush1.bf16.msra.mxu0 %v1429
        %1443 = vmatprep.subr.bf16.mxu0 0
        %1444 = vmatpush1.bf16.msra.mxu0 %v1430
        %1445 = vmatprep.subr.bf16.mxu0 0
        %1446 = vmatpush1.bf16.msra.mxu0 %v1431
        %1447 = vmatprep.subr.bf16.mxu0 0
        %1448 = vmatpush1.bf16.msra.mxu0 %v1432
        %1449 = vmatprep.subr.bf16.mxu0 0
        %1450 = vmatpush1.bf16.msra.mxu0 0
        %1451 = vmatprep.subr.bf16.mxu0 0
        %1452 = vmatpush1.bf16.msra.mxu0 0
        %1453 = vmatprep.subr.bf16.mxu0 0
        %1454 = vmatpush1.bf16.msra.mxu0 0
        %1455 = vmatprep.subr.bf16.mxu0 0
        %1456 = vmatpush1.bf16.msra.mxu0 0
        %1457 = vmatprep.subr.bf16.mxu0 0
        %1458 = vmatpush1.bf16.msra.mxu0 0
        %1459 = vmatprep.subr.bf16.mxu0 0
        %1460 = vmatpush1.bf16.msra.mxu0 0
        %1461 = vmatprep.subr.bf16.mxu0 0
        %1462 = vmatpush1.bf16.msra.mxu0 0
        %1463 = vmatprep.subr.bf16.mxu0 0
        %1464 = vmatpush1.bf16.msra.mxu0 0
        %1465 = vmatprep.subr.bf16.mxu0 0
        %1466 = vmatpush1.bf16.msra.mxu0 0
        %1467 = vmatprep.subr.bf16.mxu0 0
        %1468 = vmatpush1.bf16.msra.mxu0 0
        %1469 = vmatprep.subr.bf16.mxu0 0
        %1470 = vmatpush1.bf16.msra.mxu0 0
        %1471 = vmatprep.subr.bf16.mxu0 0
        %1472 = vmatpush1.bf16.msra.mxu0 0
        %1473 = vmatprep.mubr.bf16.mxu0 0
        %1474 = vmatmul.mubr.bf16.gmra.mrb[0].mxu0 %v1439
        %v1475 = vpop.f32.mrb[0].mxu0
        %v1476 = vadd.f32 %v1411, %v1475
        %v1477 = vpop.f32.mrb[0].mxu0
        %v1478 = vpop.f32.mrb[0].mxu0
        %v1479 = vpop.f32.mrb[0].mxu0
        %1480 = vdwg.mxu0
        %v1481 = vadd.f32 %v1476, %v1328
        %v1482 = vld [vmem:[%s807] sm:$0x1]
        %v1483 = vld [vmem:[%s810] sm:$0x1]
        %v1484 = vsel %vm837, %v1481, 0.0
        %1485 = vadd.xlane.f32.xlu0 %v1484
        %v1486 = vpop.xlane.xlu0 %1485
        %v1487 = vmul.f32 %v1486, %v1304
        %v1488 = vsub.f32 %v1481, %v1487
        %v1489 = vmul.f32 %v1488, %v1488
        %v1490 = vsel %vm837, %v1489, 0.0
        %1491 = vadd.xlane.f32.xlu0 %v1490
        %v1492 = vpop.xlane.xlu0 %1491
        %v1493 = vmul.f32 %v1492, %v1304
        %v1494 = vadd.f32 %v1493, 1e-06
        %v1495 = vrsqrt.pop %v1494
        %v1496 = vmul.f32 %v1488, %v1495
        %v1498 = vlaneseq
        %v1499 = vshrl.u32 %v1498, 7
        %v1500 = vsub.s32 0, %v1499
        %v1501 = vrot.slane %v1482, %v1500
        %v1503 = vmul.f32 %v1496, %v1501
        %v1505 = vlaneseq
        %v1506 = vshrl.u32 %v1505, 7
        %v1507 = vsub.s32 0, %v1506
        %v1508 = vrot.slane %v1483, %v1507
        %v1510 = vadd.f32 %v1503, %v1508
        %1511 = vst.msk [vmem:[#allocation2] sm:$0xff] %vm837, %v1510
        %p1512 = scmp.eq.s32.totalorder %s43, 1
        // Predicated region
        $region101: #{tpu_custom_call.1} parent=79 // pred_check
          %p1513 = pneg %p1512
        $region102: #{tpu_custom_call.1} parent=79 // pred_check_branch
          %1515 = sbr.rel (%p1513) target = $region104
        $region103: #{tpu_custom_call.1} parent=79 // pred_region
          %1516 = vst.msk [vmem:[%s769] sm:$0xff] %vm837, %v1510
        $region104: #{tpu_custom_call.1} parent=79 // pred_fallthru
          _
        %s1517 = sand.u32 %s448, 1
        %s1518 = scalar_lea.sflag [#allocation6], %s1517
        %s1519 = sand.u32 %s448, 1
        %s1520 = smul.addr %s1519, 8
        %s1521 = scalar_lea.vmem [#allocation12], %s1520
        // Predicated region
        $region105: #{tpu_custom_call.1} parent=79 // pred_check
          %p1522 = pneg %p458
        $region106: #{tpu_custom_call.1} parent=79 // pred_check_branch
          %1524 = sbr.rel (%p1522) target = $region108
        $region107: #{tpu_custom_call.1} parent=79 // pred_region
          %s1526 = ssub.s32 128, 128
          %1527 = vsyncadd %s1518, %s1526
          %s1528 = smul.addr %s42, 128
          %s1529 = scalar_lea.hbm %s15, %s1528
          %s1531 = sshll.u32 %s1521, 4
          %s1532 = int_to_ptr.vmem [resolvable:$true] %s1531
          %1534 = dma.vmem_to_hbm [thread:$0]  %s1532, 128, %s1529, %s1518
        $region108: #{tpu_custom_call.1} parent=79 // pred_fallthru
          _
      $region80: #{tpu_custom_call.1} parent=5 // pred_fallthru
        _
      %p1535 = scmp.le.s32.totalorder 2, %s33
      // Predicated region
      $region109: #{tpu_custom_call.1} parent=5 // pred_check
        %p1536 = pneg %p1535
      $region110: #{tpu_custom_call.1} parent=5 // pred_check_branch
        %1538 = sbr.rel (%p1536) target = $region112
      $region111: #{tpu_custom_call.1} parent=5 // pred_region
        %s1539 = ssub.s32 %s33, 2
        // Predicated region
        $region113: #{tpu_custom_call.1} parent=111 // pred_check
          %p1540 = pneg %p464
        $region114: #{tpu_custom_call.1} parent=111 // pred_check_branch
          %1542 = sbr.rel (%p1540) target = $region116
        $region115: #{tpu_custom_call.1} parent=111 // pred_region
          %s1543 = sand.u32 %s449, 1
          %s1544 = scalar_lea.sflag [#allocation6], %s1543
          %s1545 = sand.u32 %s449, 1
          %s1546 = smul.addr %s1545, 8
          %s1547 = scalar_lea.vmem [#allocation12], %s1546
          %1548 = dma.done %s1544, 128
        $region116: #{tpu_custom_call.1} parent=111 // pred_fallthru
          _
      $region112: #{tpu_custom_call.1} parent=5 // pred_fallthru
        _
    $region6: #{tpu_custom_call.1} parent=1 // loop_footer
      %s37 = sadd.s32 1, %s33
    $region7: #{tpu_custom_call.1} parent=1 // loop_footer_branch
      %32 = sbr.rel target = $region3
    $region8: #{tpu_custom_call.1} parent=1 // loop_exit
      _
    %1549 = vsyncpa [#allocation5], 1
    %s1550 = scalar_lea.sflag [#allocation5], 1
    %1551 = vsyncpa %s1550, 1
    %1552 = vsyncpa [#allocation8], 1
    %s1553 = scalar_lea.sflag [#allocation8], 1
    %1554 = vsyncpa %s1553, 1
    %1555 = vsyncpa [#allocation11], 1
    %s1556 = scalar_lea.sflag [#allocation11], 1
    %1557 = vsyncpa %s1556, 1
    %1558 = vsyncpa [#allocation6], 1
    %s1559 = scalar_lea.sflag [#allocation6], 1
    %1560 = vsyncpa %s1559, 1

</llo_original>
